<compile_context>
chip_gen: v7x
topology: tpu7x:2x2x1
jax: 0.10.0
libtpu: 0.0.40
codegen_flags: <defaults>
</compile_context>

<pallas_src>
import functools

import jax
import jax.numpy as jnp
from jax.experimental import pallas as pl
from jax.experimental.pallas import tpu as pltpu

IN_DIM = 7      # len(labels_in)  = #to_optimize + 1 ('time')
H1 = 100
H2 = 40
OUT_DIM = 8     # len(labels_out) = #elements_to_trace
LANE = 128      # lane-dense padding target for hidden dims


def _round_up(n, m):
    return ((n + m - 1) // m) * m


def mlp_kernel(x_ref, w1_ref, w2_ref, w3_ref, b12_ref, b3_ref, o_ref):
    # One batch tile per grid step; weights/biases are VMEM-resident.
    x = x_ref[...]                                           # (tb, 7)
    h1 = jnp.tanh(
        jnp.dot(x, w1_ref[...], preferred_element_type=jnp.float32)
        + b12_ref[0:1, :]
    )                                                        # (tb, 128), cols>=100 are 0
    h2 = jnp.tanh(
        jnp.dot(h1, w2_ref[...], preferred_element_type=jnp.float32)
        + b12_ref[1:2, :]
    )                                                        # (tb, 128), cols>=40 are 0
    o_ref[...] = (
        jnp.dot(h2, w3_ref[...], preferred_element_type=jnp.float32)
        + b3_ref[...]
    )                                                        # (tb, 8) — lane width = full out dim


def prepare_params(w1, b1, w2, b2, w3, b3):
    """One-time zero-padding of parameters (hoisted out of the forward pass).

    Weights are stored (in_features, out_features). Padding with zeros is
    numerically identical: padded columns stay exactly 0 through tanh, and the
    padded rows of w3 contribute nothing.
    """
    f32 = jnp.float32
    w1p = jnp.pad(w1.astype(f32), ((0, 0), (0, LANE - w1.shape[1])))           # (7, 128)
    w2p = jnp.pad(w2.astype(f32), ((0, LANE - w2.shape[0]),
                                   (0, LANE - w2.shape[1])))                   # (128, 128)
    w3p = jnp.pad(w3.astype(f32), ((0, LANE - w3.shape[0]), (0, 0)))           # (128, 8)
    b12 = jnp.concatenate(
        [
            jnp.pad(b1.reshape(1, -1).astype(f32), ((0, 0), (0, LANE - b1.size))),
            jnp.pad(b2.reshape(1, -1).astype(f32), ((0, 0), (0, LANE - b2.size))),
        ],
        axis=0,
    )                                                                          # (2, 128)
    b3p = b3.reshape(1, -1).astype(f32)                                        # (1, 8)
    return w1p, w2p, w3p, b12, b3p


@functools.partial(jax.jit, static_argnames=("block_b",))
def mlp_forward(x, params, *, block_b=4096):
    """x: (B, in_dim) f32; params = prepare_params(...) (padded, cached)."""
    w1p, w2p, w3p, b12, b3p = params
    batch, in_dim = x.shape
    out_dim = w3p.shape[1]
    f32 = jnp.float32

    # ---- Batch tiling ----
    # Always an even grid (>= 2) so v7x's two TensorCores are load-balanced
    # (harmless on single-TC v5e/v6e); tile rows a multiple of 8 for the
    # (8, 128) tiling rule; small batches collapse to exactly two tiles.
    block_b = max(8, _round_up(block_b, 8))
    grid_n = max(2, _round_up(pl.cdiv(batch, block_b), 2))
    tb = _round_up(pl.cdiv(batch, grid_n), 8)
    b_padded = grid_n * tb

    x = x.astype(f32)
    if b_padded != batch:
        x = jnp.pad(x, ((0, b_padded - batch), (0, 0)))

    resident = pl.Buffered(1)  # constant index_map -> no double buffer needed

    out = pl.pallas_call(
        mlp_kernel,
        out_shape=jax.ShapeDtypeStruct((b_padded, out_dim), f32),
        grid=(grid_n,),
        in_specs=[
            pl.BlockSpec((tb, in_dim), lambda i: (i, 0)),            # streamed x tiles
            pl.BlockSpec((in_dim, LANE), lambda i: (0, 0),
                         pipeline_mode=resident),                    # w1 resident
            pl.BlockSpec((LANE, LANE), lambda i: (0, 0),
                         pipeline_mode=resident),                    # w2 resident
            pl.BlockSpec((LANE, out_dim), lambda i: (0, 0),
                         pipeline_mode=resident),                    # w3 resident
            pl.BlockSpec((2, LANE), lambda i: (0, 0),
                         pipeline_mode=resident),                    # b1/b2 packed, resident
            pl.BlockSpec((1, out_dim), lambda i: (0, 0),
                         pipeline_mode=resident),                    # b3 resident
        ],
        out_specs=pl.BlockSpec((tb, out_dim), lambda i: (i, 0)),     # narrow (8-col) output
        compiler_params=pltpu.CompilerParams(
            dimension_semantics=("parallel",),                       # megacore on v7x
        ),
    )(x, w1p, w2p, w3p, b12, b3p)

    # Only trim padded rows; output columns are already the logical width.
    return out[:batch]


def init_linear(key, fan_in, fan_out):
    # Mirror torch.nn.Linear default init: U(-1/sqrt(fan_in), 1/sqrt(fan_in))
    kw, kb = jax.random.split(key)
    bound = 1.0 / jnp.sqrt(float(fan_in))
    w = jax.random.uniform(kw, (fan_in, fan_out), jnp.float32, -bound, bound)
    b = jax.random.uniform(kb, (1, fan_out), jnp.float32, -bound, bound)
    return w, b


def reference_forward(x, w1, b1, w2, b2, w3, b3):
    h1 = jnp.tanh(x @ w1 + b1)
    h2 = jnp.tanh(h1 @ w2 + b2)
    return h2 @ w3 + b3


if __name__ == "__main__":
    key = jax.random.PRNGKey(0)
    kx, k1, k2, k3 = jax.random.split(key, 4)

    # Batch intentionally not a multiple of 8 to exercise the padding path and
    # the even 2-step grid (small-batch fast path), while staying small.
    batch = 1000
    x = jax.random.normal(kx, (batch, IN_DIM), jnp.float32)

    w1, b1 = init_linear(k1, IN_DIM, H1)
    w2, b2 = init_linear(k2, H1, H2)
    w3, b3 = init_linear(k3, H2, OUT_DIM)

    params = prepare_params(w1, b1, w2, b2, w3, b3)   # padded once, reused

    out = mlp_forward(x, params)
    out = jax.block_until_ready(out)

    ref = reference_forward(x, w1, b1, w2, b2, w3, b3)
    assert out.shape == (batch, OUT_DIM)
    assert jnp.allclose(out, ref, atol=1e-4, rtol=1e-4), "mismatch vs reference"

    print("KERNEL_OK")
</pallas_src>

<mosaic_0001>
module attributes {stable_mosaic.version = 11 : i64} {
  func.func @mlp_kernel(%arg0: i32, %arg1: memref<504x7xf32, #tpu.memory_space<vmem>>, %arg2: memref<7x128xf32, #tpu.memory_space<vmem>>, %arg3: memref<128x128xf32, #tpu.memory_space<vmem>>, %arg4: memref<128x8xf32, #tpu.memory_space<vmem>>, %arg5: memref<2x128xf32, #tpu.memory_space<vmem>>, %arg6: memref<1x8xf32, #tpu.memory_space<vmem>>, %arg7: memref<504x8xf32, #tpu.memory_space<vmem>>) attributes {dimension_semantics = [#tpu.dimension_semantics<parallel>], iteration_bounds = array<i64: 2>, scalar_prefetch = 0 : i64, scratch_operands = 0 : i64, tpu.core_type = #tpu.core_type<tc>, window_params = [{transform_indices = @transform_0, window_bounds = array<i64: 504, 7>}, {pipeline_mode = #tpu.pipeline_mode<synchronous>, transform_indices = @transform_1, window_bounds = array<i64: 7, 128>}, {pipeline_mode = #tpu.pipeline_mode<synchronous>, transform_indices = @transform_2, window_bounds = array<i64: 128, 128>}, {pipeline_mode = #tpu.pipeline_mode<synchronous>, transform_indices = @transform_3, window_bounds = array<i64: 128, 8>}, {pipeline_mode = #tpu.pipeline_mode<synchronous>, transform_indices = @transform_4, window_bounds = array<i64: 2, 128>}, {pipeline_mode = #tpu.pipeline_mode<synchronous>, transform_indices = @transform_5, window_bounds = array<i64: 1, 8>}, {transform_indices = @transform_6, window_bounds = array<i64: 504, 8>}]} {
    %c0 = arith.constant 0 : index
    %c0_0 = arith.constant 0 : index
    %0 = vector.load %arg1[%c0, %c0_0] : memref<504x7xf32, #tpu.memory_space<vmem>>, vector<504x7xf32>
    %c0_1 = arith.constant 0 : index
    %c0_2 = arith.constant 0 : index
    %1 = vector.load %arg2[%c0_1, %c0_2] : memref<7x128xf32, #tpu.memory_space<vmem>>, vector<7x128xf32>
    %cst = arith.constant dense<0.000000e+00> : vector<504x128xf32>
    %2 = tpu.matmul %0, %1, %cst {dimension_numbers = #tpu.dot_dimension_numbers<[1], [0], [0], [1], [0, 0, 1, 1], [], []>} : vector<504x7xf32>, vector<7x128xf32>, vector<504x128xf32> -> vector<504x128xf32>
    %c0_3 = arith.constant 0 : index
    %c0_4 = arith.constant 0 : index
    %3 = vector.load %arg5[%c0_3, %c0_4] : memref<2x128xf32, #tpu.memory_space<vmem>>, vector<1x128xf32>
    %4 = vector.broadcast %3 : vector<1x128xf32> to vector<504x128xf32>
    %5 = arith.addf %2, %4 : vector<504x128xf32>
    %6 = math.tanh %5 : vector<504x128xf32>
    %c0_5 = arith.constant 0 : index
    %c0_6 = arith.constant 0 : index
    %7 = vector.load %arg3[%c0_5, %c0_6] : memref<128x128xf32, #tpu.memory_space<vmem>>, vector<128x128xf32>
    %cst_7 = arith.constant dense<0.000000e+00> : vector<504x128xf32>
    %8 = tpu.matmul %6, %7, %cst_7 {dimension_numbers = #tpu.dot_dimension_numbers<[1], [0], [0], [1], [0, 0, 1, 1], [], []>} : vector<504x128xf32>, vector<128x128xf32>, vector<504x128xf32> -> vector<504x128xf32>
    %c1 = arith.constant 1 : index
    %c0_8 = arith.constant 0 : index
    %9 = vector.load %arg5[%c1, %c0_8] : memref<2x128xf32, #tpu.memory_space<vmem>>, vector<1x128xf32>
    %10 = vector.broadcast %9 : vector<1x128xf32> to vector<504x128xf32>
    %11 = arith.addf %8, %10 : vector<504x128xf32>
    %12 = math.tanh %11 : vector<504x128xf32>
    %c0_9 = arith.constant 0 : index
    %c0_10 = arith.constant 0 : index
    %13 = vector.load %arg4[%c0_9, %c0_10] : memref<128x8xf32, #tpu.memory_space<vmem>>, vector<128x8xf32>
    %cst_11 = arith.constant dense<0.000000e+00> : vector<504x8xf32>
    %14 = tpu.matmul %12, %13, %cst_11 {dimension_numbers = #tpu.dot_dimension_numbers<[1], [0], [0], [1], [0, 0, 1, 1], [], []>} : vector<504x128xf32>, vector<128x8xf32>, vector<504x8xf32> -> vector<504x8xf32>
    %c0_12 = arith.constant 0 : index
    %c0_13 = arith.constant 0 : index
    %15 = vector.load %arg6[%c0_12, %c0_13] : memref<1x8xf32, #tpu.memory_space<vmem>>, vector<1x8xf32>
    %16 = vector.broadcast %15 : vector<1x8xf32> to vector<504x8xf32>
    %17 = arith.addf %14, %16 : vector<504x8xf32>
    %c0_14 = arith.constant 0 : index
    %c0_15 = arith.constant 0 : index
    %18 = vector.load %arg7[%c0_14, %c0_15] : memref<504x8xf32, #tpu.memory_space<vmem>>, vector<504x8xf32>
    tpu.vector_store %arg7[%c0_14, %c0_15], %17 {strides = array<i32>} : memref<504x8xf32, #tpu.memory_space<vmem>>, vector<504x8xf32>,
    return
  }
  func.func @transform_0(%arg0: i32) -> (i32, i32) {
    %c0_i32 = arith.constant 0 : i32
    %c0_i32_0 = arith.constant 0 : i32
    return %arg0, %c0_i32 : i32, i32
  }
  func.func @transform_1(%arg0: i32) -> (i32, i32) {
    %c0_i32 = arith.constant 0 : i32
    %c0_i32_0 = arith.constant 0 : i32
    %c0_i32_1 = arith.constant 0 : i32
    return %c0_i32, %c0_i32_0 : i32, i32
  }
  func.func @transform_2(%arg0: i32) -> (i32, i32) {
    %c0_i32 = arith.constant 0 : i32
    %c0_i32_0 = arith.constant 0 : i32
    %c0_i32_1 = arith.constant 0 : i32
    return %c0_i32, %c0_i32_0 : i32, i32
  }
  func.func @transform_3(%arg0: i32) -> (i32, i32) {
    %c0_i32 = arith.constant 0 : i32
    %c0_i32_0 = arith.constant 0 : i32
    %c0_i32_1 = arith.constant 0 : i32
    return %c0_i32, %c0_i32_0 : i32, i32
  }
  func.func @transform_4(%arg0: i32) -> (i32, i32) {
    %c0_i32 = arith.constant 0 : i32
    %c0_i32_0 = arith.constant 0 : i32
    %c0_i32_1 = arith.constant 0 : i32
    return %c0_i32, %c0_i32_0 : i32, i32
  }
  func.func @transform_5(%arg0: i32) -> (i32, i32) {
    %c0_i32 = arith.constant 0 : i32
    %c0_i32_0 = arith.constant 0 : i32
    %c0_i32_1 = arith.constant 0 : i32
    return %c0_i32, %c0_i32_0 : i32, i32
  }
  func.func @transform_6(%arg0: i32) -> (i32, i32) {
    %c0_i32 = arith.constant 0 : i32
    %c0_i32_0 = arith.constant 0 : i32
    return %arg0, %c0_i32 : i32, i32
  }
}

</mosaic_0001>

<llo_original>
// kernel: mlp_forward.1
$region0: #{mlp_forward.1}
  #allocation0 [shape = 'u32[]', space=smem, size = 0x4, offset = 0x4, fixed_abs, tag = 'smem constant byte address 0x4 - core index']
  #allocation1 [shape = 'u32[144,128]{1,0:T(1,128)}', space=vmem, size = 0x12000, scoped, tag = 'internal scratch']
  %s0 = inlined_call_operand.vmem [shape: f32[1008,7], index: 0, kind: input, shape index: {}]
  %s1 = inlined_call_operand.vmem [shape: f32[7,128], index: 1, kind: input, shape index: {}]
  %s2 = inlined_call_operand.vmem [shape: f32[128,128], index: 2, kind: input, shape index: {}]
  %s3 = inlined_call_operand.vmem [shape: f32[128,8], index: 3, kind: input, shape index: {}]
  %s4 = inlined_call_operand.vmem [shape: f32[2,128], index: 4, kind: input, shape index: {}]
  %s5 = inlined_call_operand.vmem [shape: f32[1,8], index: 5, kind: input, shape index: {}]
  %s6 = inlined_call_operand.vmem [shape: f32[1008,8], index: 6, kind: output, shape index: {}]
  %s7 = sld [smem:[#allocation0]]
  $region57: #{mlp_forward.1} parent=0
    _
  %s9 = ssub.s32 1, %s7
  %s10 = scalar_select 0, %s9, %s7
  loop: start=0, step=1, limit=4
  $region2: #{mlp_forward.1} parent=0 // loop_pre_header
    _
  $region3: #{mlp_forward.1} parent=0 // loop_header
    %s12 = sphi 0, %s16
    %p13 = scmp.ge.s32.totalorder %s12, 4
    %s22 = sphi 0, %s24
    %s25 = sphi 0, %s22
    %s26 = sphi 0, %s25
    %s42 = sphi 0, %s26
    %s46 = sphi 0, %s46
    %s48 = sphi 0, %s46
    %s49 = sphi 0, %s48
    %s63 = sphi 0, %s49
    %s67 = sphi 0, %s67
    %s69 = sphi 0, %s67
    %s70 = sphi 0, %s69
    %s84 = sphi 0, %s70
    %s88 = sphi 0, %s88
    %s90 = sphi 0, %s88
    %s91 = sphi 0, %s90
    %s105 = sphi 0, %s91
    %s109 = sphi 0, %s109
    %s111 = sphi 0, %s109
    %s112 = sphi 0, %s111
    %s126 = sphi 0, %s112
    %s130 = sphi 0, %s130
    %s132 = sphi 0, %s130
    %s133 = sphi 0, %s132
    %s147 = sphi 0, %s133
    %s153 = sphi 0, %s155
    %s156 = sphi 0, %s153
    %s157 = sphi 0, %s156
    %s173 = sphi 0, %s157
  $region4: #{mlp_forward.1} parent=0 // loop_header_branch
    %15 = sbr.rel (%p13) target = $region8
  $region5: #{mlp_forward.1} parent=0 // loop_body
    %s17 = ssub.s32 %s12, 1
    %s18 = ssub.s32 %s12, 2
    %s19 = sadd.s32 %s12, 1
    %s20 = ssub.s32 %s12, %s19
    %p21 = scmp.eq.s32.totalorder %s20, 0
    %s23 = sadd.s32 %s22, 1
    %s24 = scalar_select %p21, %s22, %s23
    %p27 = pneg %p21
    %p28 = scmp.eq.s32.totalorder %s12, 1
    %p29 = por %p27, %p28
    %p30 = scmp.ne.s32.totalorder %s22, %s25
    %p31 = scmp.eq.s32.totalorder %s12, 0
    %p32 = por %p30, %p31
    %p33 = scmp.ne.s32.totalorder %s22, %s25
    %p34 = scmp.eq.s32.totalorder %s17, 1
    %p35 = por %p33, %p34
    %p36 = scmp.ne.s32.totalorder %s25, %s26
    %p37 = scmp.eq.s32.totalorder %s17, 0
    %p38 = por %p36, %p37
    %p39 = scmp.ne.s32.totalorder %s25, %s26
    %p40 = scmp.eq.s32.totalorder %s18, 1
    %p41 = por %p39, %p40
    %p43 = scmp.ne.s32.totalorder %s26, %s42
    %p44 = scmp.eq.s32.totalorder %s18, 0
    %p45 = por %p43, %p44
    %s47 = sadd.s32 %s46, 1
    %p50 = scmp.eq.s32.totalorder %s12, 1
    %p51 = scmp.ne.s32.totalorder %s46, %s48
    %p52 = scmp.eq.s32.totalorder %s12, 0
    %p53 = por %p51, %p52
    %p54 = scmp.ne.s32.totalorder %s46, %s48
    %p55 = scmp.eq.s32.totalorder %s17, 1
    %p56 = por %p54, %p55
    %p57 = scmp.ne.s32.totalorder %s48, %s49
    %p58 = scmp.eq.s32.totalorder %s17, 0
    %p59 = por %p57, %p58
    %p60 = scmp.ne.s32.totalorder %s48, %s49
    %p61 = scmp.eq.s32.totalorder %s18, 1
    %p62 = por %p60, %p61
    %p64 = scmp.ne.s32.totalorder %s49, %s63
    %p65 = scmp.eq.s32.totalorder %s18, 0
    %p66 = por %p64, %p65
    %s68 = sadd.s32 %s67, 1
    %p71 = scmp.eq.s32.totalorder %s12, 1
    %p72 = scmp.ne.s32.totalorder %s67, %s69
    %p73 = scmp.eq.s32.totalorder %s12, 0
    %p74 = por %p72, %p73
    %p75 = scmp.ne.s32.totalorder %s67, %s69
    %p76 = scmp.eq.s32.totalorder %s17, 1
    %p77 = por %p75, %p76
    %p78 = scmp.ne.s32.totalorder %s69, %s70
    %p79 = scmp.eq.s32.totalorder %s17, 0
    %p80 = por %p78, %p79
    %p81 = scmp.ne.s32.totalorder %s69, %s70
    %p82 = scmp.eq.s32.totalorder %s18, 1
    %p83 = por %p81, %p82
    %p85 = scmp.ne.s32.totalorder %s70, %s84
    %p86 = scmp.eq.s32.totalorder %s18, 0
    %p87 = por %p85, %p86
    %s89 = sadd.s32 %s88, 1
    %p92 = scmp.eq.s32.totalorder %s12, 1
    %p93 = scmp.ne.s32.totalorder %s88, %s90
    %p94 = scmp.eq.s32.totalorder %s12, 0
    %p95 = por %p93, %p94
    %p96 = scmp.ne.s32.totalorder %s88, %s90
    %p97 = scmp.eq.s32.totalorder %s17, 1
    %p98 = por %p96, %p97
    %p99 = scmp.ne.s32.totalorder %s90, %s91
    %p100 = scmp.eq.s32.totalorder %s17, 0
    %p101 = por %p99, %p100
    %p102 = scmp.ne.s32.totalorder %s90, %s91
    %p103 = scmp.eq.s32.totalorder %s18, 1
    %p104 = por %p102, %p103
    %p106 = scmp.ne.s32.totalorder %s91, %s105
    %p107 = scmp.eq.s32.totalorder %s18, 0
    %p108 = por %p106, %p107
    %s110 = sadd.s32 %s109, 1
    %p113 = scmp.eq.s32.totalorder %s12, 1
    %p114 = scmp.ne.s32.totalorder %s109, %s111
    %p115 = scmp.eq.s32.totalorder %s12, 0
    %p116 = por %p114, %p115
    %p117 = scmp.ne.s32.totalorder %s109, %s111
    %p118 = scmp.eq.s32.totalorder %s17, 1
    %p119 = por %p117, %p118
    %p120 = scmp.ne.s32.totalorder %s111, %s112
    %p121 = scmp.eq.s32.totalorder %s17, 0
    %p122 = por %p120, %p121
    %p123 = scmp.ne.s32.totalorder %s111, %s112
    %p124 = scmp.eq.s32.totalorder %s18, 1
    %p125 = por %p123, %p124
    %p127 = scmp.ne.s32.totalorder %s112, %s126
    %p128 = scmp.eq.s32.totalorder %s18, 0
    %p129 = por %p127, %p128
    %s131 = sadd.s32 %s130, 1
    %p134 = scmp.eq.s32.totalorder %s12, 1
    %p135 = scmp.ne.s32.totalorder %s130, %s132
    %p136 = scmp.eq.s32.totalorder %s12, 0
    %p137 = por %p135, %p136
    %p138 = scmp.ne.s32.totalorder %s130, %s132
    %p139 = scmp.eq.s32.totalorder %s17, 1
    %p140 = por %p138, %p139
    %p141 = scmp.ne.s32.totalorder %s132, %s133
    %p142 = scmp.eq.s32.totalorder %s17, 0
    %p143 = por %p141, %p142
    %p144 = scmp.ne.s32.totalorder %s132, %s133
    %p145 = scmp.eq.s32.totalorder %s18, 1
    %p146 = por %p144, %p145
    %p148 = scmp.ne.s32.totalorder %s133, %s147
    %p149 = scmp.eq.s32.totalorder %s18, 0
    %p150 = por %p148, %p149
    %s151 = ssub.s32 %s12, %s19
    %p152 = scmp.eq.s32.totalorder %s151, 0
    %s154 = sadd.s32 %s153, 1
    %s155 = scalar_select %p152, %s153, %s154
    %p158 = pneg %p152
    %p159 = scmp.eq.s32.totalorder %s12, 1
    %p160 = por %p158, %p159
    %p161 = scmp.ne.s32.totalorder %s153, %s156
    %p162 = scmp.eq.s32.totalorder %s12, 0
    %p163 = por %p161, %p162
    %p164 = scmp.ne.s32.totalorder %s153, %s156
    %p165 = scmp.eq.s32.totalorder %s17, 1
    %p166 = por %p164, %p165
    %p167 = scmp.ne.s32.totalorder %s156, %s157
    %p168 = scmp.eq.s32.totalorder %s17, 0
    %p169 = por %p167, %p168
    %p170 = scmp.ne.s32.totalorder %s156, %s157
    %p171 = scmp.eq.s32.totalorder %s18, 1
    %p172 = por %p170, %p171
    %p174 = scmp.ne.s32.totalorder %s157, %s173
    %p175 = scmp.eq.s32.totalorder %s18, 0
    %p176 = por %p174, %p175
    %p177 = scmp.le.s32.totalorder 1, %s12
    %p178 = scmp.lt.s32.totalorder %s12, 3
    %p179 = pnand %p177, %p178
    %p180 = pneg %p179
    // Predicated region
    $region9: #{mlp_forward.1} parent=5 // pred_check
      _
    $region10: #{mlp_forward.1} parent=5 // pred_check_branch
      %182 = sbr.rel (%p179) target = $region12
    $region11: #{mlp_forward.1} parent=5 // pred_region
      %s183 = ssub.s32 %s12, 1
      // Predicated region
      $region13: #{mlp_forward.1} parent=11 // pred_check
        %p184 = pneg %p59
      $region14: #{mlp_forward.1} parent=11 // pred_check_branch
        %186 = sbr.rel (%p184) target = $region16
      $region15: #{mlp_forward.1} parent=11 // pred_region
        _
      $region16: #{mlp_forward.1} parent=11 // pred_fallthru
        _
      // Predicated region
      $region17: #{mlp_forward.1} parent=11 // pred_check
        %p187 = pneg %p80
      $region18: #{mlp_forward.1} parent=11 // pred_check_branch
        %189 = sbr.rel (%p187) target = $region20
      $region19: #{mlp_forward.1} parent=11 // pred_region
        _
      $region20: #{mlp_forward.1} parent=11 // pred_fallthru
        _
      // Predicated region
      $region21: #{mlp_forward.1} parent=11 // pred_check
        %p190 = pneg %p101
      $region22: #{mlp_forward.1} parent=11 // pred_check_branch
        %192 = sbr.rel (%p190) target = $region24
      $region23: #{mlp_forward.1} parent=11 // pred_region
        _
      $region24: #{mlp_forward.1} parent=11 // pred_fallthru
        _
      // Predicated region
      $region25: #{mlp_forward.1} parent=11 // pred_check
        %p193 = pneg %p122
      $region26: #{mlp_forward.1} parent=11 // pred_check_branch
        %195 = sbr.rel (%p193) target = $region28
      $region27: #{mlp_forward.1} parent=11 // pred_region
        _
      $region28: #{mlp_forward.1} parent=11 // pred_fallthru
        _
      // Predicated region
      $region29: #{mlp_forward.1} parent=11 // pred_check
        %p196 = pneg %p143
      $region30: #{mlp_forward.1} parent=11 // pred_check_branch
        %198 = sbr.rel (%p196) target = $region32
      $region31: #{mlp_forward.1} parent=11 // pred_region
        _
      $region32: #{mlp_forward.1} parent=11 // pred_fallthru
        _
    $region12: #{mlp_forward.1} parent=5 // pred_fallthru
      _
    %p199 = scmp.lt.s32.totalorder %s12, 2
    // Predicated region
    $region33: #{mlp_forward.1} parent=5 // pred_check
      %p200 = pneg %p199
    $region34: #{mlp_forward.1} parent=5 // pred_check_branch
      %202 = sbr.rel (%p200) target = $region36
    $region35: #{mlp_forward.1} parent=5 // pred_region
      // Predicated region
      $region37: #{mlp_forward.1} parent=35 // pred_check
        %p203 = pneg %p32
      $region38: #{mlp_forward.1} parent=35 // pred_check_branch
        %205 = sbr.rel (%p203) target = $region40
      $region39: #{mlp_forward.1} parent=35 // pred_region
        %s206 = smul.u32 63, %s12
        %p207 = scmp.lt.s32.totalorder %s206, 125
        %s208 = scalar_select %p207, %s206, 125
        %s209 = smul.addr %s208, 8
        %s210 = scalar_lea.vmem %s0, %s209
        %s211 = smul.u32 63, %s12
      $region40: #{mlp_forward.1} parent=35 // pred_fallthru
        _
    $region36: #{mlp_forward.1} parent=5 // pred_fallthru
      _
    %p212 = scmp.le.s32.totalorder 1, %s12
    %p213 = scmp.lt.s32.totalorder %s12, 3
    %p214 = pnand %p212, %p213
    %p215 = pneg %p214
    // Predicated region
    $region41: #{mlp_forward.1} parent=5 // pred_check
      _
    $region42: #{mlp_forward.1} parent=5 // pred_check_branch
      %217 = sbr.rel (%p214) target = $region44
    $region43: #{mlp_forward.1} parent=5 // pred_region
      %s218 = ssub.s32 %s12, 1
      %s219 = smul.u32 63, %s17
      %p220 = scmp.lt.s32.totalorder %s219, 125
      %s221 = scalar_select %p220, %s219, 125
      %s222 = smul.addr %s221, 8
      %s223 = scalar_lea.vmem %s0, %s222
      %p224 = pneg %p38
      %p225 = pneg %p35
      %p226 = pneg %p59
      %p227 = pneg %p56
      %p228 = pneg %p80
      %p229 = pneg %p77
      %p230 = pneg %p101
      %p231 = pneg %p98
      %p232 = pneg %p122
      %p233 = pneg %p119
      %p234 = pneg %p143
      %p235 = pneg %p140
      %p236 = pneg %p169
      %p237 = pneg %p166
      %s238 = smul.u32 63, %s17
      %p239 = scmp.lt.s32.totalorder %s238, 125
      %s240 = scalar_select %p239, %s238, 125
      %s241 = smul.addr %s240, 8
      %s242 = scalar_lea.vmem %s6, %s241
      %s243 = smul.u32 63, %s17
      %p244 = scmp.lt.s32.totalorder %s243, 125
      %s245 = scalar_select %p244, %s243, 125
      %s246 = smul.addr %s245, 8
      %s247 = scalar_lea.vmem %s0, %s246
      %s248 = smul.u32 63, %s17
      %s249 = smul.u32 63, %s17
      %p250 = scmp.lt.s32.totalorder %s249, 125
      %s251 = scalar_select %p250, %s249, 125
      %s252 = smul.addr %s251, 8
      %s253 = scalar_lea.vmem %s6, %s252
      %s254 = smul.u32 63, %s17
      %v255 = vld [vmem:[%s247] sm:$0xff]
      %v256 = vld [vmem:[%s247 + $0x8] sm:$0xff]
      %v257 = vld [vmem:[%s247 + $0x10] sm:$0xff]
      %v258 = vld [vmem:[%s247 + $0x18] sm:$0xff]
      %v259 = vld [vmem:[%s247 + $0x20] sm:$0xff]
      %v260 = vld [vmem:[%s247 + $0x28] sm:$0xff]
      %v261 = vld [vmem:[%s247 + $0x30] sm:$0xff]
      %v262 = vld [vmem:[%s247 + $0x38] sm:$0xff]
      %v263 = vld [vmem:[%s247 + $0x40] sm:$0xff]
      %v264 = vld [vmem:[%s247 + $0x48] sm:$0xff]
      %v265 = vld [vmem:[%s247 + $0x50] sm:$0xff]
      %v266 = vld [vmem:[%s247 + $0x58] sm:$0xff]
      %v267 = vld [vmem:[%s247 + $0x60] sm:$0xff]
      %v268 = vld [vmem:[%s247 + $0x68] sm:$0xff]
      %v269 = vld [vmem:[%s247 + $0x70] sm:$0xff]
      %v270 = vld [vmem:[%s247 + $0x78] sm:$0xff]
      %v271 = vld [vmem:[%s247 + $0x80] sm:$0xff]
      %v272 = vld [vmem:[%s247 + $0x88] sm:$0xff]
      %v273 = vld [vmem:[%s247 + $0x90] sm:$0xff]
      %v274 = vld [vmem:[%s247 + $0x98] sm:$0xff]
      %v275 = vld [vmem:[%s247 + $0xa0] sm:$0xff]
      %v276 = vld [vmem:[%s247 + $0xa8] sm:$0xff]
      %v277 = vld [vmem:[%s247 + $0xb0] sm:$0xff]
      %v278 = vld [vmem:[%s247 + $0xb8] sm:$0xff]
      %v279 = vld [vmem:[%s247 + $0xc0] sm:$0xff]
      %v280 = vld [vmem:[%s247 + $0xc8] sm:$0xff]
      %v281 = vld [vmem:[%s247 + $0xd0] sm:$0xff]
      %v282 = vld [vmem:[%s247 + $0xd8] sm:$0xff]
      %v283 = vld [vmem:[%s247 + $0xe0] sm:$0xff]
      %v284 = vld [vmem:[%s247 + $0xe8] sm:$0xff]
      %v285 = vld [vmem:[%s247 + $0xf0] sm:$0xff]
      %v286 = vld [vmem:[%s247 + $0xf8] sm:$0xff]
      %v287 = vld [vmem:[%s247 + $0x100] sm:$0xff]
      %v288 = vld [vmem:[%s247 + $0x108] sm:$0xff]
      %v289 = vld [vmem:[%s247 + $0x110] sm:$0xff]
      %v290 = vld [vmem:[%s247 + $0x118] sm:$0xff]
      %v291 = vld [vmem:[%s247 + $0x120] sm:$0xff]
      %v292 = vld [vmem:[%s247 + $0x128] sm:$0xff]
      %v293 = vld [vmem:[%s247 + $0x130] sm:$0xff]
      %v294 = vld [vmem:[%s247 + $0x138] sm:$0xff]
      %v295 = vld [vmem:[%s247 + $0x140] sm:$0xff]
      %v296 = vld [vmem:[%s247 + $0x148] sm:$0xff]
      %v297 = vld [vmem:[%s247 + $0x150] sm:$0xff]
      %v298 = vld [vmem:[%s247 + $0x158] sm:$0xff]
      %v299 = vld [vmem:[%s247 + $0x160] sm:$0xff]
      %v300 = vld [vmem:[%s247 + $0x168] sm:$0xff]
      %v301 = vld [vmem:[%s247 + $0x170] sm:$0xff]
      %v302 = vld [vmem:[%s247 + $0x178] sm:$0xff]
      %v303 = vld [vmem:[%s247 + $0x180] sm:$0xff]
      %v304 = vld [vmem:[%s247 + $0x188] sm:$0xff]
      %v305 = vld [vmem:[%s247 + $0x190] sm:$0xff]
      %v306 = vld [vmem:[%s247 + $0x198] sm:$0xff]
      %v307 = vld [vmem:[%s247 + $0x1a0] sm:$0xff]
      %v308 = vld [vmem:[%s247 + $0x1a8] sm:$0xff]
      %v309 = vld [vmem:[%s247 + $0x1b0] sm:$0xff]
      %v310 = vld [vmem:[%s247 + $0x1b8] sm:$0xff]
      %v311 = vld [vmem:[%s247 + $0x1c0] sm:$0xff]
      %v312 = vld [vmem:[%s247 + $0x1c8] sm:$0xff]
      %v313 = vld [vmem:[%s247 + $0x1d0] sm:$0xff]
      %v314 = vld [vmem:[%s247 + $0x1d8] sm:$0xff]
      %v315 = vld [vmem:[%s247 + $0x1e0] sm:$0xff]
      %v316 = vld [vmem:[%s247 + $0x1e8] sm:$0xff]
      %v317 = vld [vmem:[%s247 + $0x1f0] sm:$0xff]
      %v318 = vld [vmem:[%s1] sm:$0x7f]
      %v319 = vld [vmem:[%s4] sm:$0x1]
      %v320 = vlaneseq
      %v321 = vshrl.u32 %v320, 7
      %v322 = vsub.s32 0, %v321
      %v323 = vrot.slane %v319, %v322
      %vm324 = vcmask 56320
      %v326 = vsel %vm324, %v255, 0
      %v329 = vsel %vm324, %v256, 0
      %v332 = vsel %vm324, %v257, 0
      %v335 = vsel %vm324, %v258, 0
      %v338 = vsel %vm324, %v259, 0
      %v341 = vsel %vm324, %v260, 0
      %v344 = vsel %vm324, %v261, 0
      %v347 = vsel %vm324, %v262, 0
      %v350 = vsel %vm324, %v263, 0
      %v353 = vsel %vm324, %v264, 0
      %v356 = vsel %vm324, %v265, 0
      %v359 = vsel %vm324, %v266, 0
      %v362 = vsel %vm324, %v267, 0
      %v365 = vsel %vm324, %v268, 0
      %v368 = vsel %vm324, %v269, 0
      %v371 = vsel %vm324, %v270, 0
      %v374 = vsel %vm324, %v271, 0
      %v377 = vsel %vm324, %v272, 0
      %v380 = vsel %vm324, %v273, 0
      %v383 = vsel %vm324, %v274, 0
      %v386 = vsel %vm324, %v275, 0
      %v389 = vsel %vm324, %v276, 0
      %v392 = vsel %vm324, %v277, 0
      %v395 = vsel %vm324, %v278, 0
      %v398 = vsel %vm324, %v279, 0
      %v401 = vsel %vm324, %v280, 0
      %v404 = vsel %vm324, %v281, 0
      %v407 = vsel %vm324, %v282, 0
      %v410 = vsel %vm324, %v283, 0
      %v413 = vsel %vm324, %v284, 0
      %v416 = vsel %vm324, %v285, 0
      %v419 = vsel %vm324, %v286, 0
      %v422 = vsel %vm324, %v287, 0
      %v425 = vsel %vm324, %v288, 0
      %v428 = vsel %vm324, %v289, 0
      %v431 = vsel %vm324, %v290, 0
      %v434 = vsel %vm324, %v291, 0
      %v437 = vsel %vm324, %v292, 0
      %v440 = vsel %vm324, %v293, 0
      %v443 = vsel %vm324, %v294, 0
      %v446 = vsel %vm324, %v295, 0
      %v449 = vsel %vm324, %v296, 0
      %v452 = vsel %vm324, %v297, 0
      %v455 = vsel %vm324, %v298, 0
      %v458 = vsel %vm324, %v299, 0
      %v461 = vsel %vm324, %v300, 0
      %v464 = vsel %vm324, %v301, 0
      %v467 = vsel %vm324, %v302, 0
      %v470 = vsel %vm324, %v303, 0
      %v473 = vsel %vm324, %v304, 0
      %v476 = vsel %vm324, %v305, 0
      %v479 = vsel %vm324, %v306, 0
      %v482 = vsel %vm324, %v307, 0
      %v485 = vsel %vm324, %v308, 0
      %v488 = vsel %vm324, %v309, 0
      %v491 = vsel %vm324, %v310, 0
      %v494 = vsel %vm324, %v311, 0
      %v497 = vsel %vm324, %v312, 0
      %v500 = vsel %vm324, %v313, 0
      %v503 = vsel %vm324, %v314, 0
      %v506 = vsel %vm324, %v315, 0
      %v509 = vsel %vm324, %v316, 0
      %v512 = vsel %vm324, %v317, 0
      %vm514 = vcmask 1046528
      %v516 = vsel %vm514, %v318, 0
      %518 = vmatprep.subr.mxu0 0.0
      %519 = vmatpush1.msra.mxu0 %v516
      %520 = vmatprep.subr.mxu0 0.0
      %521 = vmatpush1.msra.mxu0 0.0
      %522 = vmatprep.subr.mxu0 0.0
      %523 = vmatpush1.msra.mxu0 0.0
      %524 = vmatprep.subr.mxu0 0.0
      %525 = vmatpush1.msra.mxu0 0.0
      %526 = vmatprep.subr.mxu0 0.0
      %527 = vmatpush1.msra.mxu0 0.0
      %528 = vmatprep.subr.mxu0 0.0
      %529 = vmatpush1.msra.mxu0 0.0
      %530 = vmatprep.subr.mxu0 0.0
      %531 = vmatpush1.msra.mxu0 0.0
      %532 = vmatprep.subr.mxu0 0.0
      %533 = vmatpush1.msra.mxu0 0.0
      %534 = vmatprep.subr.mxu0 0.0
      %535 = vmatpush1.msra.mxu0 0.0
      %536 = vmatprep.subr.mxu0 0.0
      %537 = vmatpush1.msra.mxu0 0.0
      %538 = vmatprep.subr.mxu0 0.0
      %539 = vmatpush1.msra.mxu0 0.0
      %540 = vmatprep.subr.mxu0 0.0
      %541 = vmatpush1.msra.mxu0 0.0
      %542 = vmatprep.subr.mxu0 0.0
      %543 = vmatpush1.msra.mxu0 0.0
      %544 = vmatprep.subr.mxu0 0.0
      %545 = vmatpush1.msra.mxu0 0.0
      %546 = vmatprep.subr.mxu0 0.0
      %547 = vmatpush1.msra.mxu0 0.0
      %548 = vmatprep.subr.mxu0 0.0
      %549 = vmatpush1.msra.mxu0 0.0
      %550 = vmatprep.subr.mxu0 0.0
      %551 = vmatpush1.msra.mxu0 0.0
      %552 = vmatprep.subr.mxu0 0.0
      %553 = vmatpush1.msra.mxu0 0.0
      %554 = vmatprep.subr.mxu0 0.0
      %555 = vmatpush1.msra.mxu0 0.0
      %556 = vmatprep.subr.mxu0 0.0
      %557 = vmatpush1.msra.mxu0 0.0
      %558 = vmatprep.subr.mxu0 0.0
      %559 = vmatpush1.msra.mxu0 0.0
      %560 = vmatprep.subr.mxu0 0.0
      %561 = vmatpush1.msra.mxu0 0.0
      %562 = vmatprep.subr.mxu0 0.0
      %563 = vmatpush1.msra.mxu0 0.0
      %564 = vmatprep.subr.mxu0 0.0
      %565 = vmatpush1.msra.mxu0 0.0
      %566 = vmatprep.subr.mxu0 0.0
      %567 = vmatpush1.msra.mxu0 0.0
      %568 = vmatprep.subr.mxu0 0.0
      %569 = vmatpush1.msra.mxu0 0.0
      %570 = vmatprep.subr.mxu0 0.0
      %571 = vmatpush1.msra.mxu0 0.0
      %572 = vmatprep.subr.mxu0 0.0
      %573 = vmatpush1.msra.mxu0 0.0
      %574 = vmatprep.subr.mxu0 0.0
      %575 = vmatpush1.msra.mxu0 0.0
      %576 = vmatprep.subr.mxu0 0.0
      %577 = vmatpush1.msra.mxu0 0.0
      %578 = vmatprep.subr.mxu0 0.0
      %579 = vmatpush1.msra.mxu0 0.0
      %580 = vmatprep.subr.mxu0 0.0
      %581 = vmatpush1.msra.mxu0 0.0
      %582 = vmatprep.mubr.f32.mxu0 0.0
      %583 = vmatmul.mubr.f32.gmra.mrb[0].mxu0 %v326
      %v584 = vpop.f32.mrb[0].mxu0
      %v585 = vadd.f32 %v323, %v584
      %v586 = vpop.f32.mrb[0].mxu0
      %587 = vmatprep.mubr.f32.mxu0 0.0
      %588 = vmatmul.mubr.f32.gmra.mrb[0].mxu0 %v329
      %v589 = vpop.f32.mrb[0].mxu0
      %v590 = vadd.f32 %v323, %v589
      %v591 = vpop.f32.mrb[0].mxu0
      %592 = vmatprep.mubr.f32.mxu0 0.0
      %593 = vmatmul.mubr.f32.gmra.mrb[0].mxu0 %v332
      %v594 = vpop.f32.mrb[0].mxu0
      %v595 = vadd.f32 %v323, %v594
      %v596 = vpop.f32.mrb[0].mxu0
      %597 = vmatprep.mubr.f32.mxu0 0.0
      %598 = vmatmul.mubr.f32.gmra.mrb[0].mxu0 %v335
      %v599 = vpop.f32.mrb[0].mxu0
      %v600 = vadd.f32 %v323, %v599
      %v601 = vpop.f32.mrb[0].mxu0
      %602 = vmatprep.mubr.f32.mxu0 0.0
      %603 = vmatmul.mubr.f32.gmra.mrb[0].mxu0 %v338
      %v604 = vpop.f32.mrb[0].mxu0
      %v605 = vadd.f32 %v323, %v604
      %v606 = vpop.f32.mrb[0].mxu0
      %607 = vmatprep.mubr.f32.mxu0 0.0
      %608 = vmatmul.mubr.f32.gmra.mrb[0].mxu0 %v341
      %v609 = vpop.f32.mrb[0].mxu0
      %v610 = vadd.f32 %v323, %v609
      %v611 = vpop.f32.mrb[0].mxu0
      %612 = vmatprep.mubr.f32.mxu0 0.0
      %613 = vmatmul.mubr.f32.gmra.mrb[0].mxu0 %v344
      %v614 = vpop.f32.mrb[0].mxu0
      %v615 = vadd.f32 %v323, %v614
      %v616 = vpop.f32.mrb[0].mxu0
      %617 = vmatprep.mubr.f32.mxu0 0.0
      %618 = vmatmul.mubr.f32.gmra.mrb[0].mxu0 %v347
      %v619 = vpop.f32.mrb[0].mxu0
      %v620 = vadd.f32 %v323, %v619
      %v621 = vpop.f32.mrb[0].mxu0
      %622 = vmatprep.mubr.f32.mxu0 0.0
      %623 = vmatmul.mubr.f32.gmra.mrb[0].mxu0 %v350
      %v624 = vpop.f32.mrb[0].mxu0
      %v625 = vadd.f32 %v323, %v624
      %v626 = vpop.f32.mrb[0].mxu0
      %627 = vmatprep.mubr.f32.mxu0 0.0
      %628 = vmatmul.mubr.f32.gmra.mrb[0].mxu0 %v353
      %v629 = vpop.f32.mrb[0].mxu0
      %v630 = vadd.f32 %v323, %v629
      %v631 = vpop.f32.mrb[0].mxu0
      %632 = vmatprep.mubr.f32.mxu0 0.0
      %633 = vmatmul.mubr.f32.gmra.mrb[0].mxu0 %v356
      %v634 = vpop.f32.mrb[0].mxu0
      %v635 = vadd.f32 %v323, %v634
      %v636 = vpop.f32.mrb[0].mxu0
      %637 = vmatprep.mubr.f32.mxu0 0.0
      %638 = vmatmul.mubr.f32.gmra.mrb[0].mxu0 %v359
      %v639 = vpop.f32.mrb[0].mxu0
      %v640 = vadd.f32 %v323, %v639
      %v641 = vpop.f32.mrb[0].mxu0
      %642 = vmatprep.mubr.f32.mxu0 0.0
      %643 = vmatmul.mubr.f32.gmra.mrb[0].mxu0 %v362
      %v644 = vpop.f32.mrb[0].mxu0
      %v645 = vadd.f32 %v323, %v644
      %v646 = vpop.f32.mrb[0].mxu0
      %647 = vmatprep.mubr.f32.mxu0 0.0
      %648 = vmatmul.mubr.f32.gmra.mrb[0].mxu0 %v365
      %v649 = vpop.f32.mrb[0].mxu0
      %v650 = vadd.f32 %v323, %v649
      %v651 = vpop.f32.mrb[0].mxu0
      %652 = vmatprep.mubr.f32.mxu0 0.0
      %653 = vmatmul.mubr.f32.gmra.mrb[0].mxu0 %v368
      %v654 = vpop.f32.mrb[0].mxu0
      %v655 = vadd.f32 %v323, %v654
      %v656 = vpop.f32.mrb[0].mxu0
      %657 = vmatprep.mubr.f32.mxu0 0.0
      %658 = vmatmul.mubr.f32.gmra.mrb[0].mxu0 %v371
      %v659 = vpop.f32.mrb[0].mxu0
      %v660 = vadd.f32 %v323, %v659
      %v661 = vpop.f32.mrb[0].mxu0
      %662 = vmatprep.mubr.f32.mxu0 0.0
      %663 = vmatmul.mubr.f32.gmra.mrb[0].mxu0 %v374
      %v664 = vpop.f32.mrb[0].mxu0
      %v665 = vadd.f32 %v323, %v664
      %v666 = vpop.f32.mrb[0].mxu0
      %667 = vmatprep.mubr.f32.mxu0 0.0
      %668 = vmatmul.mubr.f32.gmra.mrb[0].mxu0 %v377
      %v669 = vpop.f32.mrb[0].mxu0
      %v670 = vadd.f32 %v323, %v669
      %v671 = vpop.f32.mrb[0].mxu0
      %672 = vmatprep.mubr.f32.mxu0 0.0
      %673 = vmatmul.mubr.f32.gmra.mrb[0].mxu0 %v380
      %v674 = vpop.f32.mrb[0].mxu0
      %v675 = vadd.f32 %v323, %v674
      %v676 = vpop.f32.mrb[0].mxu0
      %677 = vmatprep.mubr.f32.mxu0 0.0
      %678 = vmatmul.mubr.f32.gmra.mrb[0].mxu0 %v383
      %v679 = vpop.f32.mrb[0].mxu0
      %v680 = vadd.f32 %v323, %v679
      %v681 = vpop.f32.mrb[0].mxu0
      %682 = vmatprep.mubr.f32.mxu0 0.0
      %683 = vmatmul.mubr.f32.gmra.mrb[0].mxu0 %v386
      %v684 = vpop.f32.mrb[0].mxu0
      %v685 = vadd.f32 %v323, %v684
      %v686 = vpop.f32.mrb[0].mxu0
      %687 = vmatprep.mubr.f32.mxu0 0.0
      %688 = vmatmul.mubr.f32.gmra.mrb[0].mxu0 %v389
      %v689 = vpop.f32.mrb[0].mxu0
      %v690 = vadd.f32 %v323, %v689
      %v691 = vpop.f32.mrb[0].mxu0
      %692 = vmatprep.mubr.f32.mxu0 0.0
      %693 = vmatmul.mubr.f32.gmra.mrb[0].mxu0 %v392
      %v694 = vpop.f32.mrb[0].mxu0
      %v695 = vadd.f32 %v323, %v694
      %v696 = vpop.f32.mrb[0].mxu0
      %697 = vmatprep.mubr.f32.mxu0 0.0
      %698 = vmatmul.mubr.f32.gmra.mrb[0].mxu0 %v395
      %v699 = vpop.f32.mrb[0].mxu0
      %v700 = vadd.f32 %v323, %v699
      %v701 = vpop.f32.mrb[0].mxu0
      %702 = vmatprep.mubr.f32.mxu0 0.0
      %703 = vmatmul.mubr.f32.gmra.mrb[0].mxu0 %v398
      %v704 = vpop.f32.mrb[0].mxu0
      %v705 = vadd.f32 %v323, %v704
      %v706 = vpop.f32.mrb[0].mxu0
      %707 = vmatprep.mubr.f32.mxu0 0.0
      %708 = vmatmul.mubr.f32.gmra.mrb[0].mxu0 %v401
      %v709 = vpop.f32.mrb[0].mxu0
      %v710 = vadd.f32 %v323, %v709
      %v711 = vpop.f32.mrb[0].mxu0
      %712 = vmatprep.mubr.f32.mxu0 0.0
      %713 = vmatmul.mubr.f32.gmra.mrb[0].mxu0 %v404
      %v714 = vpop.f32.mrb[0].mxu0
      %v715 = vadd.f32 %v323, %v714
      %v716 = vpop.f32.mrb[0].mxu0
      %717 = vmatprep.mubr.f32.mxu0 0.0
      %718 = vmatmul.mubr.f32.gmra.mrb[0].mxu0 %v407
      %v719 = vpop.f32.mrb[0].mxu0
      %v720 = vadd.f32 %v323, %v719
      %v721 = vpop.f32.mrb[0].mxu0
      %722 = vmatprep.mubr.f32.mxu0 0.0
      %723 = vmatmul.mubr.f32.gmra.mrb[0].mxu0 %v410
      %v724 = vpop.f32.mrb[0].mxu0
      %v725 = vadd.f32 %v323, %v724
      %v726 = vpop.f32.mrb[0].mxu0
      %727 = vmatprep.mubr.f32.mxu0 0.0
      %728 = vmatmul.mubr.f32.gmra.mrb[0].mxu0 %v413
      %v729 = vpop.f32.mrb[0].mxu0
      %v730 = vadd.f32 %v323, %v729
      %v731 = vpop.f32.mrb[0].mxu0
      %732 = vmatprep.mubr.f32.mxu0 0.0
      %733 = vmatmul.mubr.f32.gmra.mrb[0].mxu0 %v416
      %v734 = vpop.f32.mrb[0].mxu0
      %v735 = vadd.f32 %v323, %v734
      %v736 = vpop.f32.mrb[0].mxu0
      %737 = vmatprep.mubr.f32.mxu0 0.0
      %738 = vmatmul.mubr.f32.gmra.mrb[0].mxu0 %v419
      %v739 = vpop.f32.mrb[0].mxu0
      %v740 = vadd.f32 %v323, %v739
      %v741 = vpop.f32.mrb[0].mxu0
      %742 = vmatprep.mubr.f32.mxu0 0.0
      %743 = vmatmul.mubr.f32.gmra.mrb[0].mxu0 %v422
      %v744 = vpop.f32.mrb[0].mxu0
      %v745 = vadd.f32 %v323, %v744
      %v746 = vpop.f32.mrb[0].mxu0
      %747 = vmatprep.mubr.f32.mxu0 0.0
      %748 = vmatmul.mubr.f32.gmra.mrb[0].mxu0 %v425
      %v749 = vpop.f32.mrb[0].mxu0
      %v750 = vadd.f32 %v323, %v749
      %v751 = vpop.f32.mrb[0].mxu0
      %752 = vmatprep.mubr.f32.mxu0 0.0
      %753 = vmatmul.mubr.f32.gmra.mrb[0].mxu0 %v428
      %v754 = vpop.f32.mrb[0].mxu0
      %v755 = vadd.f32 %v323, %v754
      %v756 = vpop.f32.mrb[0].mxu0
      %757 = vmatprep.mubr.f32.mxu0 0.0
      %758 = vmatmul.mubr.f32.gmra.mrb[0].mxu0 %v431
      %v759 = vpop.f32.mrb[0].mxu0
      %v760 = vadd.f32 %v323, %v759
      %v761 = vpop.f32.mrb[0].mxu0
      %762 = vmatprep.mubr.f32.mxu0 0.0
      %763 = vmatmul.mubr.f32.gmra.mrb[0].mxu0 %v434
      %v764 = vpop.f32.mrb[0].mxu0
      %v765 = vadd.f32 %v323, %v764
      %v766 = vpop.f32.mrb[0].mxu0
      %767 = vmatprep.mubr.f32.mxu0 0.0
      %768 = vmatmul.mubr.f32.gmra.mrb[0].mxu0 %v437
      %v769 = vpop.f32.mrb[0].mxu0
      %v770 = vadd.f32 %v323, %v769
      %v771 = vpop.f32.mrb[0].mxu0
      %772 = vmatprep.mubr.f32.mxu0 0.0
      %773 = vmatmul.mubr.f32.gmra.mrb[0].mxu0 %v440
      %v774 = vpop.f32.mrb[0].mxu0
      %v775 = vadd.f32 %v323, %v774
      %v776 = vpop.f32.mrb[0].mxu0
      %777 = vmatprep.mubr.f32.mxu0 0.0
      %778 = vmatmul.mubr.f32.gmra.mrb[0].mxu0 %v443
      %v779 = vpop.f32.mrb[0].mxu0
      %v780 = vadd.f32 %v323, %v779
      %v781 = vpop.f32.mrb[0].mxu0
      %782 = vmatprep.mubr.f32.mxu0 0.0
      %783 = vmatmul.mubr.f32.gmra.mrb[0].mxu0 %v446
      %v784 = vpop.f32.mrb[0].mxu0
      %v785 = vadd.f32 %v323, %v784
      %v786 = vpop.f32.mrb[0].mxu0
      %787 = vmatprep.mubr.f32.mxu0 0.0
      %788 = vmatmul.mubr.f32.gmra.mrb[0].mxu0 %v449
      %v789 = vpop.f32.mrb[0].mxu0
      %v790 = vadd.f32 %v323, %v789
      %v791 = vpop.f32.mrb[0].mxu0
      %792 = vmatprep.mubr.f32.mxu0 0.0
      %793 = vmatmul.mubr.f32.gmra.mrb[0].mxu0 %v452
      %v794 = vpop.f32.mrb[0].mxu0
      %v795 = vadd.f32 %v323, %v794
      %v796 = vpop.f32.mrb[0].mxu0
      %797 = vmatprep.mubr.f32.mxu0 0.0
      %798 = vmatmul.mubr.f32.gmra.mrb[0].mxu0 %v455
      %v799 = vpop.f32.mrb[0].mxu0
      %v800 = vadd.f32 %v323, %v799
      %v801 = vpop.f32.mrb[0].mxu0
      %802 = vmatprep.mubr.f32.mxu0 0.0
      %803 = vmatmul.mubr.f32.gmra.mrb[0].mxu0 %v458
      %v804 = vpop.f32.mrb[0].mxu0
      %v805 = vadd.f32 %v323, %v804
      %v806 = vpop.f32.mrb[0].mxu0
      %807 = vmatprep.mubr.f32.mxu0 0.0
      %808 = vmatmul.mubr.f32.gmra.mrb[0].mxu0 %v461
      %v809 = vpop.f32.mrb[0].mxu0
      %v810 = vadd.f32 %v323, %v809
      %v811 = vpop.f32.mrb[0].mxu0
      %812 = vmatprep.mubr.f32.mxu0 0.0
      %813 = vmatmul.mubr.f32.gmra.mrb[0].mxu0 %v464
      %v814 = vpop.f32.mrb[0].mxu0
      %v815 = vadd.f32 %v323, %v814
      %v816 = vpop.f32.mrb[0].mxu0
      %817 = vmatprep.mubr.f32.mxu0 0.0
      %818 = vmatmul.mubr.f32.gmra.mrb[0].mxu0 %v467
      %v819 = vpop.f32.mrb[0].mxu0
      %v820 = vadd.f32 %v323, %v819
      %v821 = vpop.f32.mrb[0].mxu0
      %822 = vmatprep.mubr.f32.mxu0 0.0
      %823 = vmatmul.mubr.f32.gmra.mrb[0].mxu0 %v470
      %v824 = vpop.f32.mrb[0].mxu0
      %v825 = vadd.f32 %v323, %v824
      %v826 = vpop.f32.mrb[0].mxu0
      %827 = vmatprep.mubr.f32.mxu0 0.0
      %828 = vmatmul.mubr.f32.gmra.mrb[0].mxu0 %v473
      %v829 = vpop.f32.mrb[0].mxu0
      %v830 = vadd.f32 %v323, %v829
      %v831 = vpop.f32.mrb[0].mxu0
      %832 = vmatprep.mubr.f32.mxu0 0.0
      %833 = vmatmul.mubr.f32.gmra.mrb[0].mxu0 %v476
      %v834 = vpop.f32.mrb[0].mxu0
      %v835 = vadd.f32 %v323, %v834
      %v836 = vpop.f32.mrb[0].mxu0
      %837 = vmatprep.mubr.f32.mxu0 0.0
      %838 = vmatmul.mubr.f32.gmra.mrb[0].mxu0 %v479
      %v839 = vpop.f32.mrb[0].mxu0
      %v840 = vadd.f32 %v323, %v839
      %v841 = vpop.f32.mrb[0].mxu0
      %842 = vmatprep.mubr.f32.mxu0 0.0
      %843 = vmatmul.mubr.f32.gmra.mrb[0].mxu0 %v482
      %v844 = vpop.f32.mrb[0].mxu0
      %v845 = vadd.f32 %v323, %v844
      %v846 = vpop.f32.mrb[0].mxu0
      %847 = vmatprep.mubr.f32.mxu0 0.0
      %848 = vmatmul.mubr.f32.gmra.mrb[0].mxu0 %v485
      %v849 = vpop.f32.mrb[0].mxu0
      %v850 = vadd.f32 %v323, %v849
      %v851 = vpop.f32.mrb[0].mxu0
      %852 = vmatprep.mubr.f32.mxu0 0.0
      %853 = vmatmul.mubr.f32.gmra.mrb[0].mxu0 %v488
      %v854 = vpop.f32.mrb[0].mxu0
      %v855 = vadd.f32 %v323, %v854
      %v856 = vpop.f32.mrb[0].mxu0
      %857 = vmatprep.mubr.f32.mxu0 0.0
      %858 = vmatmul.mubr.f32.gmra.mrb[0].mxu0 %v491
      %v859 = vpop.f32.mrb[0].mxu0
      %v860 = vadd.f32 %v323, %v859
      %v861 = vpop.f32.mrb[0].mxu0
      %862 = vmatprep.mubr.f32.mxu0 0.0
      %863 = vmatmul.mubr.f32.gmra.mrb[0].mxu0 %v494
      %v864 = vpop.f32.mrb[0].mxu0
      %v865 = vadd.f32 %v323, %v864
      %v866 = vpop.f32.mrb[0].mxu0
      %867 = vmatprep.mubr.f32.mxu0 0.0
      %868 = vmatmul.mubr.f32.gmra.mrb[0].mxu0 %v497
      %v869 = vpop.f32.mrb[0].mxu0
      %v870 = vadd.f32 %v323, %v869
      %v871 = vpop.f32.mrb[0].mxu0
      %872 = vmatprep.mubr.f32.mxu0 0.0
      %873 = vmatmul.mubr.f32.gmra.mrb[0].mxu0 %v500
      %v874 = vpop.f32.mrb[0].mxu0
      %v875 = vadd.f32 %v323, %v874
      %v876 = vpop.f32.mrb[0].mxu0
      %877 = vmatprep.mubr.f32.mxu0 0.0
      %878 = vmatmul.mubr.f32.gmra.mrb[0].mxu0 %v503
      %v879 = vpop.f32.mrb[0].mxu0
      %v880 = vadd.f32 %v323, %v879
      %v881 = vpop.f32.mrb[0].mxu0
      %882 = vmatprep.mubr.f32.mxu0 0.0
      %883 = vmatmul.mubr.f32.gmra.mrb[0].mxu0 %v506
      %v884 = vpop.f32.mrb[0].mxu0
      %v885 = vadd.f32 %v323, %v884
      %v886 = vpop.f32.mrb[0].mxu0
      %887 = vmatprep.mubr.f32.mxu0 0.0
      %888 = vmatmul.mubr.f32.gmra.mrb[0].mxu0 %v509
      %v889 = vpop.f32.mrb[0].mxu0
      %v890 = vadd.f32 %v323, %v889
      %v891 = vpop.f32.mrb[0].mxu0
      %892 = vmatprep.mubr.f32.mxu0 0.0
      %893 = vmatmul.mubr.f32.gmra.mrb[0].mxu0 %v512
      %v894 = vpop.f32.mrb[0].mxu0
      %v895 = vadd.f32 %v323, %v894
      %v896 = vpop.f32.mrb[0].mxu0
      %897 = vdwg.mxu0
      %v898 = vtanh.pop %v585
      %v899 = vtanh.pop %v590
      %v900 = vtanh.pop %v595
      %v901 = vtanh.pop %v600
      %v902 = vtanh.pop %v605
      %v903 = vtanh.pop %v610
      %v904 = vtanh.pop %v615
      %v905 = vtanh.pop %v620
      %v906 = vtanh.pop %v625
      %v907 = vtanh.pop %v630
      %v908 = vtanh.pop %v635
      %v909 = vtanh.pop %v640
      %v910 = vtanh.pop %v645
      %v911 = vtanh.pop %v650
      %v912 = vtanh.pop %v655
      %v913 = vtanh.pop %v660
      %v914 = vtanh.pop %v665
      %v915 = vtanh.pop %v670
      %v916 = vtanh.pop %v675
      %v917 = vtanh.pop %v680
      %v918 = vtanh.pop %v685
      %v919 = vtanh.pop %v690
      %v920 = vtanh.pop %v695
      %v921 = vtanh.pop %v700
      %v922 = vtanh.pop %v705
      %v923 = vtanh.pop %v710
      %v924 = vtanh.pop %v715
      %v925 = vtanh.pop %v720
      %v926 = vtanh.pop %v725
      %v927 = vtanh.pop %v730
      %v928 = vtanh.pop %v735
      %v929 = vtanh.pop %v740
      %v930 = vtanh.pop %v745
      %v931 = vtanh.pop %v750
      %v932 = vtanh.pop %v755
      %v933 = vtanh.pop %v760
      %v934 = vtanh.pop %v765
      %v935 = vtanh.pop %v770
      %v936 = vtanh.pop %v775
      %v937 = vtanh.pop %v780
      %v938 = vtanh.pop %v785
      %v939 = vtanh.pop %v790
      %v940 = vtanh.pop %v795
      %v941 = vtanh.pop %v800
      %v942 = vtanh.pop %v805
      %v943 = vtanh.pop %v810
      %v944 = vtanh.pop %v815
      %v945 = vtanh.pop %v820
      %v946 = vtanh.pop %v825
      %v947 = vtanh.pop %v830
      %v948 = vtanh.pop %v835
      %v949 = vtanh.pop %v840
      %v950 = vtanh.pop %v845
      %v951 = vtanh.pop %v850
      %v952 = vtanh.pop %v855
      %v953 = vtanh.pop %v860
      %v954 = vtanh.pop %v865
      %v955 = vtanh.pop %v870
      %v956 = vtanh.pop %v875
      %v957 = vtanh.pop %v880
      %v958 = vtanh.pop %v885
      %v959 = vtanh.pop %v890
      %v960 = vtanh.pop %v895
      %v961 = vld [vmem:[%s2] sm:$0xff]
      %v962 = vld [vmem:[%s2 + $0x8] sm:$0xff]
      %v963 = vld [vmem:[%s2 + $0x10] sm:$0xff]
      %v964 = vld [vmem:[%s2 + $0x18] sm:$0xff]
      %v965 = vld [vmem:[%s2 + $0x20] sm:$0xff]
      %v966 = vld [vmem:[%s2 + $0x28] sm:$0xff]
      %v967 = vld [vmem:[%s2 + $0x30] sm:$0xff]
      %v968 = vld [vmem:[%s2 + $0x38] sm:$0xff]
      %v969 = vld [vmem:[%s2 + $0x40] sm:$0xff]
      %v970 = vld [vmem:[%s2 + $0x48] sm:$0xff]
      %v971 = vld [vmem:[%s2 + $0x50] sm:$0xff]
      %v972 = vld [vmem:[%s2 + $0x58] sm:$0xff]
      %v973 = vld [vmem:[%s2 + $0x60] sm:$0xff]
      %v974 = vld [vmem:[%s2 + $0x68] sm:$0xff]
      %v975 = vld [vmem:[%s2 + $0x70] sm:$0xff]
      %v976 = vld [vmem:[%s2 + $0x78] sm:$0xff]
      %v977 = vld [vmem:[%s4 + $0x1] sm:$0x1]
      %v978 = vlaneseq
      %v979 = vshrl.u32 %v978, 7
      %v980 = vsub.s32 0, %v979
      %v981 = vrot.slane %v977, %v980
      %982 = vmatprep.subr.mxu0 0.0
      %983 = vmatpush1.msra.mxu0 %v961
      %984 = vmatprep.subr.mxu0 0.0
      %985 = vmatpush1.msra.mxu0 %v962
      %986 = vmatprep.subr.mxu0 0.0
      %987 = vmatpush1.msra.mxu0 %v963
      %988 = vmatprep.subr.mxu0 0.0
      %989 = vmatpush1.msra.mxu0 %v964
      %990 = vmatprep.subr.mxu0 0.0
      %991 = vmatpush1.msra.mxu0 %v965
      %992 = vmatprep.subr.mxu0 0.0
      %993 = vmatpush1.msra.mxu0 %v966
      %994 = vmatprep.subr.mxu0 0.0
      %995 = vmatpush1.msra.mxu0 %v967
      %996 = vmatprep.subr.mxu0 0.0
      %997 = vmatpush1.msra.mxu0 %v968
      %998 = vmatprep.subr.mxu0 0.0
      %999 = vmatpush1.msra.mxu0 %v969
      %1000 = vmatprep.subr.mxu0 0.0
      %1001 = vmatpush1.msra.mxu0 %v970
      %1002 = vmatprep.subr.mxu0 0.0
      %1003 = vmatpush1.msra.mxu0 %v971
      %1004 = vmatprep.subr.mxu0 0.0
      %1005 = vmatpush1.msra.mxu0 %v972
      %1006 = vmatprep.subr.mxu0 0.0
      %1007 = vmatpush1.msra.mxu0 %v973
      %1008 = vmatprep.subr.mxu0 0.0
      %1009 = vmatpush1.msra.mxu0 %v974
      %1010 = vmatprep.subr.mxu0 0.0
      %1011 = vmatpush1.msra.mxu0 %v975
      %1012 = vmatprep.subr.mxu0 0.0
      %1013 = vmatpush1.msra.mxu0 %v976
      %1014 = vmatprep.subr.mxu0 0.0
      %1015 = vmatpush1.msra.mxu0 0.0
      %1016 = vmatprep.subr.mxu0 0.0
      %1017 = vmatpush1.msra.mxu0 0.0
      %1018 = vmatprep.subr.mxu0 0.0
      %1019 = vmatpush1.msra.mxu0 0.0
      %1020 = vmatprep.subr.mxu0 0.0
      %1021 = vmatpush1.msra.mxu0 0.0
      %1022 = vmatprep.subr.mxu0 0.0
      %1023 = vmatpush1.msra.mxu0 0.0
      %1024 = vmatprep.subr.mxu0 0.0
      %1025 = vmatpush1.msra.mxu0 0.0
      %1026 = vmatprep.subr.mxu0 0.0
      %1027 = vmatpush1.msra.mxu0 0.0
      %1028 = vmatprep.subr.mxu0 0.0
      %1029 = vmatpush1.msra.mxu0 0.0
      %1030 = vmatprep.subr.mxu0 0.0
      %1031 = vmatpush1.msra.mxu0 0.0
      %1032 = vmatprep.subr.mxu0 0.0
      %1033 = vmatpush1.msra.mxu0 0.0
      %1034 = vmatprep.subr.mxu0 0.0
      %1035 = vmatpush1.msra.mxu0 0.0
      %1036 = vmatprep.subr.mxu0 0.0
      %1037 = vmatpush1.msra.mxu0 0.0
      %1038 = vmatprep.subr.mxu0 0.0
      %1039 = vmatpush1.msra.mxu0 0.0
      %1040 = vmatprep.subr.mxu0 0.0
      %1041 = vmatpush1.msra.mxu0 0.0
      %1042 = vmatprep.subr.mxu0 0.0
      %1043 = vmatpush1.msra.mxu0 0.0
      %1044 = vmatprep.subr.mxu0 0.0
      %1045 = vmatpush1.msra.mxu0 0.0
      %1046 = vmatprep.mubr.f32.mxu0 0.0
      %1047 = vmatmul.mubr.f32.gmra.mrb[0].mxu0 %v898
      %v1048 = vpop.f32.mrb[0].mxu0
      %v1049 = vadd.f32 %v981, %v1048
      %v1050 = vpop.f32.mrb[0].mxu0
      %1051 = vmatprep.mubr.f32.mxu0 0.0
      %1052 = vmatmul.mubr.f32.gmra.mrb[0].mxu0 %v899
      %v1053 = vpop.f32.mrb[0].mxu0
      %v1054 = vadd.f32 %v981, %v1053
      %v1055 = vpop.f32.mrb[0].mxu0
      %1056 = vmatprep.mubr.f32.mxu0 0.0
      %1057 = vmatmul.mubr.f32.gmra.mrb[0].mxu0 %v900
      %v1058 = vpop.f32.mrb[0].mxu0
      %v1059 = vadd.f32 %v981, %v1058
      %v1060 = vpop.f32.mrb[0].mxu0
      %1061 = vmatprep.mubr.f32.mxu0 0.0
      %1062 = vmatmul.mubr.f32.gmra.mrb[0].mxu0 %v901
      %v1063 = vpop.f32.mrb[0].mxu0
      %v1064 = vadd.f32 %v981, %v1063
      %v1065 = vpop.f32.mrb[0].mxu0
      %1066 = vmatprep.mubr.f32.mxu0 0.0
      %1067 = vmatmul.mubr.f32.gmra.mrb[0].mxu0 %v902
      %v1068 = vpop.f32.mrb[0].mxu0
      %v1069 = vadd.f32 %v981, %v1068
      %v1070 = vpop.f32.mrb[0].mxu0
      %1071 = vmatprep.mubr.f32.mxu0 0.0
      %1072 = vmatmul.mubr.f32.gmra.mrb[0].mxu0 %v903
      %v1073 = vpop.f32.mrb[0].mxu0
      %v1074 = vadd.f32 %v981, %v1073
      %v1075 = vpop.f32.mrb[0].mxu0
      %1076 = vmatprep.mubr.f32.mxu0 0.0
      %1077 = vmatmul.mubr.f32.gmra.mrb[0].mxu0 %v904
      %v1078 = vpop.f32.mrb[0].mxu0
      %v1079 = vadd.f32 %v981, %v1078
      %v1080 = vpop.f32.mrb[0].mxu0
      %1081 = vmatprep.mubr.f32.mxu0 0.0
      %1082 = vmatmul.mubr.f32.gmra.mrb[0].mxu0 %v905
      %v1083 = vpop.f32.mrb[0].mxu0
      %v1084 = vadd.f32 %v981, %v1083
      %v1085 = vpop.f32.mrb[0].mxu0
      %1086 = vmatprep.mubr.f32.mxu0 0.0
      %1087 = vmatmul.mubr.f32.gmra.mrb[0].mxu0 %v906
      %v1088 = vpop.f32.mrb[0].mxu0
      %v1089 = vadd.f32 %v981, %v1088
      %v1090 = vpop.f32.mrb[0].mxu0
      %1091 = vmatprep.mubr.f32.mxu0 0.0
      %1092 = vmatmul.mubr.f32.gmra.mrb[0].mxu0 %v907
      %v1093 = vpop.f32.mrb[0].mxu0
      %v1094 = vadd.f32 %v981, %v1093
      %v1095 = vpop.f32.mrb[0].mxu0
      %1096 = vmatprep.mubr.f32.mxu0 0.0
      %1097 = vmatmul.mubr.f32.gmra.mrb[0].mxu0 %v908
      %v1098 = vpop.f32.mrb[0].mxu0
      %v1099 = vadd.f32 %v981, %v1098
      %v1100 = vpop.f32.mrb[0].mxu0
      %1101 = vmatprep.mubr.f32.mxu0 0.0
      %1102 = vmatmul.mubr.f32.gmra.mrb[0].mxu0 %v909
      %v1103 = vpop.f32.mrb[0].mxu0
      %v1104 = vadd.f32 %v981, %v1103
      %v1105 = vpop.f32.mrb[0].mxu0
      %1106 = vmatprep.mubr.f32.mxu0 0.0
      %1107 = vmatmul.mubr.f32.gmra.mrb[0].mxu0 %v910
      %v1108 = vpop.f32.mrb[0].mxu0
      %v1109 = vadd.f32 %v981, %v1108
      %v1110 = vpop.f32.mrb[0].mxu0
      %1111 = vmatprep.mubr.f32.mxu0 0.0
      %1112 = vmatmul.mubr.f32.gmra.mrb[0].mxu0 %v911
      %v1113 = vpop.f32.mrb[0].mxu0
      %v1114 = vadd.f32 %v981, %v1113
      %v1115 = vpop.f32.mrb[0].mxu0
      %1116 = vmatprep.mubr.f32.mxu0 0.0
      %1117 = vmatmul.mubr.f32.gmra.mrb[0].mxu0 %v912
      %v1118 = vpop.f32.mrb[0].mxu0
      %v1119 = vadd.f32 %v981, %v1118
      %v1120 = vpop.f32.mrb[0].mxu0
      %1121 = vmatprep.mubr.f32.mxu0 0.0
      %1122 = vmatmul.mubr.f32.gmra.mrb[0].mxu0 %v913
      %v1123 = vpop.f32.mrb[0].mxu0
      %v1124 = vadd.f32 %v981, %v1123
      %v1125 = vpop.f32.mrb[0].mxu0
      %1126 = vmatprep.mubr.f32.mxu0 0.0
      %1127 = vmatmul.mubr.f32.gmra.mrb[0].mxu0 %v914
      %v1128 = vpop.f32.mrb[0].mxu0
      %v1129 = vadd.f32 %v981, %v1128
      %v1130 = vpop.f32.mrb[0].mxu0
      %1131 = vmatprep.mubr.f32.mxu0 0.0
      %1132 = vmatmul.mubr.f32.gmra.mrb[0].mxu0 %v915
      %v1133 = vpop.f32.mrb[0].mxu0
      %v1134 = vadd.f32 %v981, %v1133
      %v1135 = vpop.f32.mrb[0].mxu0
      %1136 = vmatprep.mubr.f32.mxu0 0.0
      %1137 = vmatmul.mubr.f32.gmra.mrb[0].mxu0 %v916
      %v1138 = vpop.f32.mrb[0].mxu0
      %v1139 = vadd.f32 %v981, %v1138
      %v1140 = vpop.f32.mrb[0].mxu0
      %1141 = vmatprep.mubr.f32.mxu0 0.0
      %1142 = vmatmul.mubr.f32.gmra.mrb[0].mxu0 %v917
      %v1143 = vpop.f32.mrb[0].mxu0
      %v1144 = vadd.f32 %v981, %v1143
      %v1145 = vpop.f32.mrb[0].mxu0
      %1146 = vmatprep.mubr.f32.mxu0 0.0
      %1147 = vmatmul.mubr.f32.gmra.mrb[0].mxu0 %v918
      %v1148 = vpop.f32.mrb[0].mxu0
      %v1149 = vadd.f32 %v981, %v1148
      %v1150 = vpop.f32.mrb[0].mxu0
      %1151 = vmatprep.mubr.f32.mxu0 0.0
      %1152 = vmatmul.mubr.f32.gmra.mrb[0].mxu0 %v919
      %v1153 = vpop.f32.mrb[0].mxu0
      %v1154 = vadd.f32 %v981, %v1153
      %v1155 = vpop.f32.mrb[0].mxu0
      %1156 = vmatprep.mubr.f32.mxu0 0.0
      %1157 = vmatmul.mubr.f32.gmra.mrb[0].mxu0 %v920
      %v1158 = vpop.f32.mrb[0].mxu0
      %v1159 = vadd.f32 %v981, %v1158
      %v1160 = vpop.f32.mrb[0].mxu0
      %1161 = vmatprep.mubr.f32.mxu0 0.0
      %1162 = vmatmul.mubr.f32.gmra.mrb[0].mxu0 %v921
      %v1163 = vpop.f32.mrb[0].mxu0
      %v1164 = vadd.f32 %v981, %v1163
      %v1165 = vpop.f32.mrb[0].mxu0
      %1166 = vmatprep.mubr.f32.mxu0 0.0
      %1167 = vmatmul.mubr.f32.gmra.mrb[0].mxu0 %v922
      %v1168 = vpop.f32.mrb[0].mxu0
      %v1169 = vadd.f32 %v981, %v1168
      %v1170 = vpop.f32.mrb[0].mxu0
      %1171 = vmatprep.mubr.f32.mxu0 0.0
      %1172 = vmatmul.mubr.f32.gmra.mrb[0].mxu0 %v923
      %v1173 = vpop.f32.mrb[0].mxu0
      %v1174 = vadd.f32 %v981, %v1173
      %v1175 = vpop.f32.mrb[0].mxu0
      %1176 = vmatprep.mubr.f32.mxu0 0.0
      %1177 = vmatmul.mubr.f32.gmra.mrb[0].mxu0 %v924
      %v1178 = vpop.f32.mrb[0].mxu0
      %v1179 = vadd.f32 %v981, %v1178
      %v1180 = vpop.f32.mrb[0].mxu0
      %1181 = vmatprep.mubr.f32.mxu0 0.0
      %1182 = vmatmul.mubr.f32.gmra.mrb[0].mxu0 %v925
      %v1183 = vpop.f32.mrb[0].mxu0
      %v1184 = vadd.f32 %v981, %v1183
      %v1185 = vpop.f32.mrb[0].mxu0
      %1186 = vmatprep.mubr.f32.mxu0 0.0
      %1187 = vmatmul.mubr.f32.gmra.mrb[0].mxu0 %v926
      %v1188 = vpop.f32.mrb[0].mxu0
      %v1189 = vadd.f32 %v981, %v1188
      %v1190 = vpop.f32.mrb[0].mxu0
      %1191 = vmatprep.mubr.f32.mxu0 0.0
      %1192 = vmatmul.mubr.f32.gmra.mrb[0].mxu0 %v927
      %v1193 = vpop.f32.mrb[0].mxu0
      %v1194 = vadd.f32 %v981, %v1193
      %v1195 = vpop.f32.mrb[0].mxu0
      %1196 = vmatprep.mubr.f32.mxu0 0.0
      %1197 = vmatmul.mubr.f32.gmra.mrb[0].mxu0 %v928
      %v1198 = vpop.f32.mrb[0].mxu0
      %v1199 = vadd.f32 %v981, %v1198
      %v1200 = vpop.f32.mrb[0].mxu0
      %1201 = vmatprep.mubr.f32.mxu0 0.0
      %1202 = vmatmul.mubr.f32.gmra.mrb[0].mxu0 %v929
      %v1203 = vpop.f32.mrb[0].mxu0
      %v1204 = vadd.f32 %v981, %v1203
      %v1205 = vpop.f32.mrb[0].mxu0
      %1206 = vmatprep.mubr.f32.mxu0 0.0
      %1207 = vmatmul.mubr.f32.gmra.mrb[0].mxu0 %v930
      %v1208 = vpop.f32.mrb[0].mxu0
      %v1209 = vadd.f32 %v981, %v1208
      %v1210 = vpop.f32.mrb[0].mxu0
      %1211 = vmatprep.mubr.f32.mxu0 0.0
      %1212 = vmatmul.mubr.f32.gmra.mrb[0].mxu0 %v931
      %v1213 = vpop.f32.mrb[0].mxu0
      %v1214 = vadd.f32 %v981, %v1213
      %v1215 = vpop.f32.mrb[0].mxu0
      %1216 = vmatprep.mubr.f32.mxu0 0.0
      %1217 = vmatmul.mubr.f32.gmra.mrb[0].mxu0 %v932
      %v1218 = vpop.f32.mrb[0].mxu0
      %v1219 = vadd.f32 %v981, %v1218
      %v1220 = vpop.f32.mrb[0].mxu0
      %1221 = vmatprep.mubr.f32.mxu0 0.0
      %1222 = vmatmul.mubr.f32.gmra.mrb[0].mxu0 %v933
      %v1223 = vpop.f32.mrb[0].mxu0
      %v1224 = vadd.f32 %v981, %v1223
      %v1225 = vpop.f32.mrb[0].mxu0
      %1226 = vmatprep.mubr.f32.mxu0 0.0
      %1227 = vmatmul.mubr.f32.gmra.mrb[0].mxu0 %v934
      %v1228 = vpop.f32.mrb[0].mxu0
      %v1229 = vadd.f32 %v981, %v1228
      %v1230 = vpop.f32.mrb[0].mxu0
      %1231 = vmatprep.mubr.f32.mxu0 0.0
      %1232 = vmatmul.mubr.f32.gmra.mrb[0].mxu0 %v935
      %v1233 = vpop.f32.mrb[0].mxu0
      %v1234 = vadd.f32 %v981, %v1233
      %v1235 = vpop.f32.mrb[0].mxu0
      %1236 = vmatprep.mubr.f32.mxu0 0.0
      %1237 = vmatmul.mubr.f32.gmra.mrb[0].mxu0 %v936
      %v1238 = vpop.f32.mrb[0].mxu0
      %v1239 = vadd.f32 %v981, %v1238
      %v1240 = vpop.f32.mrb[0].mxu0
      %1241 = vmatprep.mubr.f32.mxu0 0.0
      %1242 = vmatmul.mubr.f32.gmra.mrb[0].mxu0 %v937
      %v1243 = vpop.f32.mrb[0].mxu0
      %v1244 = vadd.f32 %v981, %v1243
      %v1245 = vpop.f32.mrb[0].mxu0
      %1246 = vmatprep.mubr.f32.mxu0 0.0
      %1247 = vmatmul.mubr.f32.gmra.mrb[0].mxu0 %v938
      %v1248 = vpop.f32.mrb[0].mxu0
      %v1249 = vadd.f32 %v981, %v1248
      %v1250 = vpop.f32.mrb[0].mxu0
      %1251 = vmatprep.mubr.f32.mxu0 0.0
      %1252 = vmatmul.mubr.f32.gmra.mrb[0].mxu0 %v939
      %v1253 = vpop.f32.mrb[0].mxu0
      %v1254 = vadd.f32 %v981, %v1253
      %v1255 = vpop.f32.mrb[0].mxu0
      %1256 = vmatprep.mubr.f32.mxu0 0.0
      %1257 = vmatmul.mubr.f32.gmra.mrb[0].mxu0 %v940
      %v1258 = vpop.f32.mrb[0].mxu0
      %v1259 = vadd.f32 %v981, %v1258
      %v1260 = vpop.f32.mrb[0].mxu0
      %1261 = vmatprep.mubr.f32.mxu0 0.0
      %1262 = vmatmul.mubr.f32.gmra.mrb[0].mxu0 %v941
      %v1263 = vpop.f32.mrb[0].mxu0
      %v1264 = vadd.f32 %v981, %v1263
      %v1265 = vpop.f32.mrb[0].mxu0
      %1266 = vmatprep.mubr.f32.mxu0 0.0
      %1267 = vmatmul.mubr.f32.gmra.mrb[0].mxu0 %v942
      %v1268 = vpop.f32.mrb[0].mxu0
      %v1269 = vadd.f32 %v981, %v1268
      %v1270 = vpop.f32.mrb[0].mxu0
      %1271 = vmatprep.mubr.f32.mxu0 0.0
      %1272 = vmatmul.mubr.f32.gmra.mrb[0].mxu0 %v943
      %v1273 = vpop.f32.mrb[0].mxu0
      %v1274 = vadd.f32 %v981, %v1273
      %v1275 = vpop.f32.mrb[0].mxu0
      %1276 = vmatprep.mubr.f32.mxu0 0.0
      %1277 = vmatmul.mubr.f32.gmra.mrb[0].mxu0 %v944
      %v1278 = vpop.f32.mrb[0].mxu0
      %v1279 = vadd.f32 %v981, %v1278
      %v1280 = vpop.f32.mrb[0].mxu0
      %1281 = vmatprep.mubr.f32.mxu0 0.0
      %1282 = vmatmul.mubr.f32.gmra.mrb[0].mxu0 %v945
      %v1283 = vpop.f32.mrb[0].mxu0
      %v1284 = vadd.f32 %v981, %v1283
      %v1285 = vpop.f32.mrb[0].mxu0
      %1286 = vmatprep.mubr.f32.mxu0 0.0
      %1287 = vmatmul.mubr.f32.gmra.mrb[0].mxu0 %v946
      %v1288 = vpop.f32.mrb[0].mxu0
      %v1289 = vadd.f32 %v981, %v1288
      %v1290 = vpop.f32.mrb[0].mxu0
      %1291 = vmatprep.mubr.f32.mxu0 0.0
      %1292 = vmatmul.mubr.f32.gmra.mrb[0].mxu0 %v947
      %v1293 = vpop.f32.mrb[0].mxu0
      %v1294 = vadd.f32 %v981, %v1293
      %v1295 = vpop.f32.mrb[0].mxu0
      %1296 = vmatprep.mubr.f32.mxu0 0.0
      %1297 = vmatmul.mubr.f32.gmra.mrb[0].mxu0 %v948
      %v1298 = vpop.f32.mrb[0].mxu0
      %v1299 = vadd.f32 %v981, %v1298
      %v1300 = vpop.f32.mrb[0].mxu0
      %1301 = vmatprep.mubr.f32.mxu0 0.0
      %1302 = vmatmul.mubr.f32.gmra.mrb[0].mxu0 %v949
      %v1303 = vpop.f32.mrb[0].mxu0
      %v1304 = vadd.f32 %v981, %v1303
      %v1305 = vpop.f32.mrb[0].mxu0
      %1306 = vmatprep.mubr.f32.mxu0 0.0
      %1307 = vmatmul.mubr.f32.gmra.mrb[0].mxu0 %v950
      %v1308 = vpop.f32.mrb[0].mxu0
      %v1309 = vadd.f32 %v981, %v1308
      %v1310 = vpop.f32.mrb[0].mxu0
      %1311 = vmatprep.mubr.f32.mxu0 0.0
      %1312 = vmatmul.mubr.f32.gmra.mrb[0].mxu0 %v951
      %v1313 = vpop.f32.mrb[0].mxu0
      %v1314 = vadd.f32 %v981, %v1313
      %v1315 = vpop.f32.mrb[0].mxu0
      %1316 = vmatprep.mubr.f32.mxu0 0.0
      %1317 = vmatmul.mubr.f32.gmra.mrb[0].mxu0 %v952
      %v1318 = vpop.f32.mrb[0].mxu0
      %v1319 = vadd.f32 %v981, %v1318
      %v1320 = vpop.f32.mrb[0].mxu0
      %1321 = vmatprep.mubr.f32.mxu0 0.0
      %1322 = vmatmul.mubr.f32.gmra.mrb[0].mxu0 %v953
      %v1323 = vpop.f32.mrb[0].mxu0
      %v1324 = vadd.f32 %v981, %v1323
      %v1325 = vpop.f32.mrb[0].mxu0
      %1326 = vmatprep.mubr.f32.mxu0 0.0
      %1327 = vmatmul.mubr.f32.gmra.mrb[0].mxu0 %v954
      %v1328 = vpop.f32.mrb[0].mxu0
      %v1329 = vadd.f32 %v981, %v1328
      %v1330 = vpop.f32.mrb[0].mxu0
      %1331 = vmatprep.mubr.f32.mxu0 0.0
      %1332 = vmatmul.mubr.f32.gmra.mrb[0].mxu0 %v955
      %v1333 = vpop.f32.mrb[0].mxu0
      %v1334 = vadd.f32 %v981, %v1333
      %v1335 = vpop.f32.mrb[0].mxu0
      %1336 = vmatprep.mubr.f32.mxu0 0.0
      %1337 = vmatmul.mubr.f32.gmra.mrb[0].mxu0 %v956
      %v1338 = vpop.f32.mrb[0].mxu0
      %v1339 = vadd.f32 %v981, %v1338
      %v1340 = vpop.f32.mrb[0].mxu0
      %1341 = vmatprep.mubr.f32.mxu0 0.0
      %1342 = vmatmul.mubr.f32.gmra.mrb[0].mxu0 %v957
      %v1343 = vpop.f32.mrb[0].mxu0
      %v1344 = vadd.f32 %v981, %v1343
      %v1345 = vpop.f32.mrb[0].mxu0
      %1346 = vmatprep.mubr.f32.mxu0 0.0
      %1347 = vmatmul.mubr.f32.gmra.mrb[0].mxu0 %v958
      %v1348 = vpop.f32.mrb[0].mxu0
      %v1349 = vadd.f32 %v981, %v1348
      %v1350 = vpop.f32.mrb[0].mxu0
      %1351 = vmatprep.mubr.f32.mxu0 0.0
      %1352 = vmatmul.mubr.f32.gmra.mrb[0].mxu0 %v959
      %v1353 = vpop.f32.mrb[0].mxu0
      %v1354 = vadd.f32 %v981, %v1353
      %v1355 = vpop.f32.mrb[0].mxu0
      %1356 = vmatprep.mubr.f32.mxu0 0.0
      %1357 = vmatmul.mubr.f32.gmra.mrb[0].mxu0 %v960
      %v1358 = vpop.f32.mrb[0].mxu0
      %v1359 = vadd.f32 %v981, %v1358
      %v1360 = vpop.f32.mrb[0].mxu0
      %1361 = vdwg.mxu0
      %v1362 = vtanh.pop %v1049
      %v1363 = vtanh.pop %v1054
      %v1364 = vtanh.pop %v1059
      %v1365 = vtanh.pop %v1064
      %v1366 = vtanh.pop %v1069
      %v1367 = vtanh.pop %v1074
      %v1368 = vtanh.pop %v1079
      %v1369 = vtanh.pop %v1084
      %v1370 = vtanh.pop %v1089
      %v1371 = vtanh.pop %v1094
      %v1372 = vtanh.pop %v1099
      %v1373 = vtanh.pop %v1104
      %v1374 = vtanh.pop %v1109
      %v1375 = vtanh.pop %v1114
      %v1376 = vtanh.pop %v1119
      %v1377 = vtanh.pop %v1124
      %v1378 = vtanh.pop %v1129
      %v1379 = vtanh.pop %v1134
      %v1380 = vtanh.pop %v1139
      %v1381 = vtanh.pop %v1144
      %v1382 = vtanh.pop %v1149
      %v1383 = vtanh.pop %v1154
      %v1384 = vtanh.pop %v1159
      %v1385 = vtanh.pop %v1164
      %v1386 = vtanh.pop %v1169
      %v1387 = vtanh.pop %v1174
      %v1388 = vtanh.pop %v1179
      %v1389 = vtanh.pop %v1184
      %v1390 = vtanh.pop %v1189
      %v1391 = vtanh.pop %v1194
      %v1392 = vtanh.pop %v1199
      %v1393 = vtanh.pop %v1204
      %v1394 = vtanh.pop %v1209
      %v1395 = vtanh.pop %v1214
      %v1396 = vtanh.pop %v1219
      %v1397 = vtanh.pop %v1224
      %v1398 = vtanh.pop %v1229
      %v1399 = vtanh.pop %v1234
      %v1400 = vtanh.pop %v1239
      %v1401 = vtanh.pop %v1244
      %v1402 = vtanh.pop %v1249
      %v1403 = vtanh.pop %v1254
      %v1404 = vtanh.pop %v1259
      %v1405 = vtanh.pop %v1264
      %v1406 = vtanh.pop %v1269
      %v1407 = vtanh.pop %v1274
      %v1408 = vtanh.pop %v1279
      %v1409 = vtanh.pop %v1284
      %v1410 = vtanh.pop %v1289
      %v1411 = vtanh.pop %v1294
      %v1412 = vtanh.pop %v1299
      %v1413 = vtanh.pop %v1304
      %v1414 = vtanh.pop %v1309
      %v1415 = vtanh.pop %v1314
      %v1416 = vtanh.pop %v1319
      %v1417 = vtanh.pop %v1324
      %v1418 = vtanh.pop %v1329
      %v1419 = vtanh.pop %v1334
      %v1420 = vtanh.pop %v1339
      %v1421 = vtanh.pop %v1344
      %v1422 = vtanh.pop %v1349
      %v1423 = vtanh.pop %v1354
      %v1424 = vtanh.pop %v1359
      %v1425 = vld [vmem:[%s3] sm:$0xff]
      %v1426 = vld [vmem:[%s3 + $0x8] sm:$0xff]
      %v1427 = vld [vmem:[%s3 + $0x10] sm:$0xff]
      %v1428 = vld [vmem:[%s3 + $0x18] sm:$0xff]
      %v1429 = vld [vmem:[%s3 + $0x20] sm:$0xff]
      %v1430 = vld [vmem:[%s3 + $0x28] sm:$0xff]
      %v1431 = vld [vmem:[%s3 + $0x30] sm:$0xff]
      %v1432 = vld [vmem:[%s3 + $0x38] sm:$0xff]
      %v1433 = vld [vmem:[%s3 + $0x40] sm:$0xff]
      %v1434 = vld [vmem:[%s3 + $0x48] sm:$0xff]
      %v1435 = vld [vmem:[%s3 + $0x50] sm:$0xff]
      %v1436 = vld [vmem:[%s3 + $0x58] sm:$0xff]
      %v1437 = vld [vmem:[%s3 + $0x60] sm:$0xff]
      %v1438 = vld [vmem:[%s3 + $0x68] sm:$0xff]
      %v1439 = vld [vmem:[%s3 + $0x70] sm:$0xff]
      %v1440 = vld [vmem:[%s3 + $0x78] sm:$0xff]
      %v1441 = vld [vmem:[%s5] sm:$0x1]
      %v1443 = vlaneseq
      %v1444 = vshrl.u32 %v1443, 7
      %v1445 = vsub.s32 0, %v1444
      %v1446 = vrot.slane %v1441, %v1445
      %1448 = vmatprep.subr.mxu0 0.0
      %1449 = vmatpush1.msra.mxu0 %v1425
      %1450 = vmatprep.subr.mxu0 0.0
      %1451 = vmatpush1.msra.mxu0 %v1426
      %1452 = vmatprep.subr.mxu0 0.0
      %1453 = vmatpush1.msra.mxu0 %v1427
      %1454 = vmatprep.subr.mxu0 0.0
      %1455 = vmatpush1.msra.mxu0 %v1428
      %1456 = vmatprep.subr.mxu0 0.0
      %1457 = vmatpush1.msra.mxu0 %v1429
      %1458 = vmatprep.subr.mxu0 0.0
      %1459 = vmatpush1.msra.mxu0 %v1430
      %1460 = vmatprep.subr.mxu0 0.0
      %1461 = vmatpush1.msra.mxu0 %v1431
      %1462 = vmatprep.subr.mxu0 0.0
      %1463 = vmatpush1.msra.mxu0 %v1432
      %1464 = vmatprep.subr.mxu0 0.0
      %1465 = vmatpush1.msra.mxu0 %v1433
      %1466 = vmatprep.subr.mxu0 0.0
      %1467 = vmatpush1.msra.mxu0 %v1434
      %1468 = vmatprep.subr.mxu0 0.0
      %1469 = vmatpush1.msra.mxu0 %v1435
      %1470 = vmatprep.subr.mxu0 0.0
      %1471 = vmatpush1.msra.mxu0 %v1436
      %1472 = vmatprep.subr.mxu0 0.0
      %1473 = vmatpush1.msra.mxu0 %v1437
      %1474 = vmatprep.subr.mxu0 0.0
      %1475 = vmatpush1.msra.mxu0 %v1438
      %1476 = vmatprep.subr.mxu0 0.0
      %1477 = vmatpush1.msra.mxu0 %v1439
      %1478 = vmatprep.subr.mxu0 0.0
      %1479 = vmatpush1.msra.mxu0 %v1440
      %1480 = vmatprep.subr.mxu0 0.0
      %1481 = vmatpush1.msra.mxu0 0.0
      %1482 = vmatprep.subr.mxu0 0.0
      %1483 = vmatpush1.msra.mxu0 0.0
      %1484 = vmatprep.subr.mxu0 0.0
      %1485 = vmatpush1.msra.mxu0 0.0
      %1486 = vmatprep.subr.mxu0 0.0
      %1487 = vmatpush1.msra.mxu0 0.0
      %1488 = vmatprep.subr.mxu0 0.0
      %1489 = vmatpush1.msra.mxu0 0.0
      %1490 = vmatprep.subr.mxu0 0.0
      %1491 = vmatpush1.msra.mxu0 0.0
      %1492 = vmatprep.subr.mxu0 0.0
      %1493 = vmatpush1.msra.mxu0 0.0
      %1494 = vmatprep.subr.mxu0 0.0
      %1495 = vmatpush1.msra.mxu0 0.0
      %1496 = vmatprep.subr.mxu0 0.0
      %1497 = vmatpush1.msra.mxu0 0.0
      %1498 = vmatprep.subr.mxu0 0.0
      %1499 = vmatpush1.msra.mxu0 0.0
      %1500 = vmatprep.subr.mxu0 0.0
      %1501 = vmatpush1.msra.mxu0 0.0
      %1502 = vmatprep.subr.mxu0 0.0
      %1503 = vmatpush1.msra.mxu0 0.0
      %1504 = vmatprep.subr.mxu0 0.0
      %1505 = vmatpush1.msra.mxu0 0.0
      %1506 = vmatprep.subr.mxu0 0.0
      %1507 = vmatpush1.msra.mxu0 0.0
      %1508 = vmatprep.subr.mxu0 0.0
      %1509 = vmatpush1.msra.mxu0 0.0
      %1510 = vmatprep.subr.mxu0 0.0
      %1511 = vmatpush1.msra.mxu0 0.0
      %1512 = vmatprep.mubr.f32.mxu0 0.0
      %1513 = vmatmul.mubr.f32.gmra.mrb[0].mxu0 %v1362
      %v1514 = vpop.f32.mrb[0].mxu0
      %v1515 = vadd.f32 %v1446, %v1514
      %v1516 = vpop.f32.mrb[0].mxu0
      %1517 = vmatprep.mubr.f32.mxu0 0.0
      %1518 = vmatmul.mubr.f32.gmra.mrb[0].mxu0 %v1363
      %v1519 = vpop.f32.mrb[0].mxu0
      %v1520 = vadd.f32 %v1446, %v1519
      %v1521 = vpop.f32.mrb[0].mxu0
      %1522 = vmatprep.mubr.f32.mxu0 0.0
      %1523 = vmatmul.mubr.f32.gmra.mrb[0].mxu0 %v1364
      %v1524 = vpop.f32.mrb[0].mxu0
      %v1525 = vadd.f32 %v1446, %v1524
      %v1526 = vpop.f32.mrb[0].mxu0
      %1527 = vmatprep.mubr.f32.mxu0 0.0
      %1528 = vmatmul.mubr.f32.gmra.mrb[0].mxu0 %v1365
      %v1529 = vpop.f32.mrb[0].mxu0
      %v1530 = vadd.f32 %v1446, %v1529
      %v1531 = vpop.f32.mrb[0].mxu0
      %1532 = vmatprep.mubr.f32.mxu0 0.0
      %1533 = vmatmul.mubr.f32.gmra.mrb[0].mxu0 %v1366
      %v1534 = vpop.f32.mrb[0].mxu0
      %v1535 = vadd.f32 %v1446, %v1534
      %v1536 = vpop.f32.mrb[0].mxu0
      %1537 = vmatprep.mubr.f32.mxu0 0.0
      %1538 = vmatmul.mubr.f32.gmra.mrb[0].mxu0 %v1367
      %v1539 = vpop.f32.mrb[0].mxu0
      %v1540 = vadd.f32 %v1446, %v1539
      %v1541 = vpop.f32.mrb[0].mxu0
      %1542 = vmatprep.mubr.f32.mxu0 0.0
      %1543 = vmatmul.mubr.f32.gmra.mrb[0].mxu0 %v1368
      %v1544 = vpop.f32.mrb[0].mxu0
      %v1545 = vadd.f32 %v1446, %v1544
      %v1546 = vpop.f32.mrb[0].mxu0
      %1547 = vmatprep.mubr.f32.mxu0 0.0
      %1548 = vmatmul.mubr.f32.gmra.mrb[0].mxu0 %v1369
      %v1549 = vpop.f32.mrb[0].mxu0
      %v1550 = vadd.f32 %v1446, %v1549
      %v1551 = vpop.f32.mrb[0].mxu0
      %1552 = vmatprep.mubr.f32.mxu0 0.0
      %1553 = vmatmul.mubr.f32.gmra.mrb[0].mxu0 %v1370
      %v1554 = vpop.f32.mrb[0].mxu0
      %v1555 = vadd.f32 %v1446, %v1554
      %v1556 = vpop.f32.mrb[0].mxu0
      %1557 = vmatprep.mubr.f32.mxu0 0.0
      %1558 = vmatmul.mubr.f32.gmra.mrb[0].mxu0 %v1371
      %v1559 = vpop.f32.mrb[0].mxu0
      %v1560 = vadd.f32 %v1446, %v1559
      %v1561 = vpop.f32.mrb[0].mxu0
      %1562 = vmatprep.mubr.f32.mxu0 0.0
      %1563 = vmatmul.mubr.f32.gmra.mrb[0].mxu0 %v1372
      %v1564 = vpop.f32.mrb[0].mxu0
      %v1565 = vadd.f32 %v1446, %v1564
      %v1566 = vpop.f32.mrb[0].mxu0
      %1567 = vmatprep.mubr.f32.mxu0 0.0
      %1568 = vmatmul.mubr.f32.gmra.mrb[0].mxu0 %v1373
      %v1569 = vpop.f32.mrb[0].mxu0
      %v1570 = vadd.f32 %v1446, %v1569
      %v1571 = vpop.f32.mrb[0].mxu0
      %1572 = vmatprep.mubr.f32.mxu0 0.0
      %1573 = vmatmul.mubr.f32.gmra.mrb[0].mxu0 %v1374
      %v1574 = vpop.f32.mrb[0].mxu0
      %v1575 = vadd.f32 %v1446, %v1574
      %v1576 = vpop.f32.mrb[0].mxu0
      %1577 = vmatprep.mubr.f32.mxu0 0.0
      %1578 = vmatmul.mubr.f32.gmra.mrb[0].mxu0 %v1375
      %v1579 = vpop.f32.mrb[0].mxu0
      %v1580 = vadd.f32 %v1446, %v1579
      %v1581 = vpop.f32.mrb[0].mxu0
      %1582 = vmatprep.mubr.f32.mxu0 0.0
      %1583 = vmatmul.mubr.f32.gmra.mrb[0].mxu0 %v1376
      %v1584 = vpop.f32.mrb[0].mxu0
      %v1585 = vadd.f32 %v1446, %v1584
      %v1586 = vpop.f32.mrb[0].mxu0
      %1587 = vmatprep.mubr.f32.mxu0 0.0
      %1588 = vmatmul.mubr.f32.gmra.mrb[0].mxu0 %v1377
      %v1589 = vpop.f32.mrb[0].mxu0
      %v1590 = vadd.f32 %v1446, %v1589
      %v1591 = vpop.f32.mrb[0].mxu0
      %1592 = vmatprep.mubr.f32.mxu0 0.0
      %1593 = vmatmul.mubr.f32.gmra.mrb[0].mxu0 %v1378
      %v1594 = vpop.f32.mrb[0].mxu0
      %v1595 = vadd.f32 %v1446, %v1594
      %v1596 = vpop.f32.mrb[0].mxu0
      %1597 = vmatprep.mubr.f32.mxu0 0.0
      %1598 = vmatmul.mubr.f32.gmra.mrb[0].mxu0 %v1379
      %v1599 = vpop.f32.mrb[0].mxu0
      %v1600 = vadd.f32 %v1446, %v1599
      %v1601 = vpop.f32.mrb[0].mxu0
      %1602 = vmatprep.mubr.f32.mxu0 0.0
      %1603 = vmatmul.mubr.f32.gmra.mrb[0].mxu0 %v1380
      %v1604 = vpop.f32.mrb[0].mxu0
      %v1605 = vadd.f32 %v1446, %v1604
      %v1606 = vpop.f32.mrb[0].mxu0
      %1607 = vmatprep.mubr.f32.mxu0 0.0
      %1608 = vmatmul.mubr.f32.gmra.mrb[0].mxu0 %v1381
      %v1609 = vpop.f32.mrb[0].mxu0
      %v1610 = vadd.f32 %v1446, %v1609
      %v1611 = vpop.f32.mrb[0].mxu0
      %1612 = vmatprep.mubr.f32.mxu0 0.0
      %1613 = vmatmul.mubr.f32.gmra.mrb[0].mxu0 %v1382
      %v1614 = vpop.f32.mrb[0].mxu0
      %v1615 = vadd.f32 %v1446, %v1614
      %v1616 = vpop.f32.mrb[0].mxu0
      %1617 = vmatprep.mubr.f32.mxu0 0.0
      %1618 = vmatmul.mubr.f32.gmra.mrb[0].mxu0 %v1383
      %v1619 = vpop.f32.mrb[0].mxu0
      %v1620 = vadd.f32 %v1446, %v1619
      %v1621 = vpop.f32.mrb[0].mxu0
      %1622 = vmatprep.mubr.f32.mxu0 0.0
      %1623 = vmatmul.mubr.f32.gmra.mrb[0].mxu0 %v1384
      %v1624 = vpop.f32.mrb[0].mxu0
      %v1625 = vadd.f32 %v1446, %v1624
      %v1626 = vpop.f32.mrb[0].mxu0
      %1627 = vmatprep.mubr.f32.mxu0 0.0
      %1628 = vmatmul.mubr.f32.gmra.mrb[0].mxu0 %v1385
      %v1629 = vpop.f32.mrb[0].mxu0
      %v1630 = vadd.f32 %v1446, %v1629
      %v1631 = vpop.f32.mrb[0].mxu0
      %1632 = vmatprep.mubr.f32.mxu0 0.0
      %1633 = vmatmul.mubr.f32.gmra.mrb[0].mxu0 %v1386
      %v1634 = vpop.f32.mrb[0].mxu0
      %v1635 = vadd.f32 %v1446, %v1634
      %v1636 = vpop.f32.mrb[0].mxu0
      %1637 = vmatprep.mubr.f32.mxu0 0.0
      %1638 = vmatmul.mubr.f32.gmra.mrb[0].mxu0 %v1387
      %v1639 = vpop.f32.mrb[0].mxu0
      %v1640 = vadd.f32 %v1446, %v1639
      %v1641 = vpop.f32.mrb[0].mxu0
      %1642 = vmatprep.mubr.f32.mxu0 0.0
      %1643 = vmatmul.mubr.f32.gmra.mrb[0].mxu0 %v1388
      %v1644 = vpop.f32.mrb[0].mxu0
      %v1645 = vadd.f32 %v1446, %v1644
      %v1646 = vpop.f32.mrb[0].mxu0
      %1647 = vmatprep.mubr.f32.mxu0 0.0
      %1648 = vmatmul.mubr.f32.gmra.mrb[0].mxu0 %v1389
      %v1649 = vpop.f32.mrb[0].mxu0
      %v1650 = vadd.f32 %v1446, %v1649
      %v1651 = vpop.f32.mrb[0].mxu0
      %1652 = vmatprep.mubr.f32.mxu0 0.0
      %1653 = vmatmul.mubr.f32.gmra.mrb[0].mxu0 %v1390
      %v1654 = vpop.f32.mrb[0].mxu0
      %v1655 = vadd.f32 %v1446, %v1654
      %v1656 = vpop.f32.mrb[0].mxu0
      %1657 = vmatprep.mubr.f32.mxu0 0.0
      %1658 = vmatmul.mubr.f32.gmra.mrb[0].mxu0 %v1391
      %v1659 = vpop.f32.mrb[0].mxu0
      %v1660 = vadd.f32 %v1446, %v1659
      %v1661 = vpop.f32.mrb[0].mxu0
      %1662 = vmatprep.mubr.f32.mxu0 0.0
      %1663 = vmatmul.mubr.f32.gmra.mrb[0].mxu0 %v1392
      %v1664 = vpop.f32.mrb[0].mxu0
      %v1665 = vadd.f32 %v1446, %v1664
      %v1666 = vpop.f32.mrb[0].mxu0
      %1667 = vmatprep.mubr.f32.mxu0 0.0
      %1668 = vmatmul.mubr.f32.gmra.mrb[0].mxu0 %v1393
      %v1669 = vpop.f32.mrb[0].mxu0
      %v1670 = vadd.f32 %v1446, %v1669
      %v1671 = vpop.f32.mrb[0].mxu0
      %1672 = vmatprep.mubr.f32.mxu0 0.0
      %1673 = vmatmul.mubr.f32.gmra.mrb[0].mxu0 %v1394
      %v1674 = vpop.f32.mrb[0].mxu0
      %v1675 = vadd.f32 %v1446, %v1674
      %v1676 = vpop.f32.mrb[0].mxu0
      %1677 = vmatprep.mubr.f32.mxu0 0.0
      %1678 = vmatmul.mubr.f32.gmra.mrb[0].mxu0 %v1395
      %v1679 = vpop.f32.mrb[0].mxu0
      %v1680 = vadd.f32 %v1446, %v1679
      %v1681 = vpop.f32.mrb[0].mxu0
      %1682 = vmatprep.mubr.f32.mxu0 0.0
      %1683 = vmatmul.mubr.f32.gmra.mrb[0].mxu0 %v1396
      %v1684 = vpop.f32.mrb[0].mxu0
      %v1685 = vadd.f32 %v1446, %v1684
      %v1686 = vpop.f32.mrb[0].mxu0
      %1687 = vmatprep.mubr.f32.mxu0 0.0
      %1688 = vmatmul.mubr.f32.gmra.mrb[0].mxu0 %v1397
      %v1689 = vpop.f32.mrb[0].mxu0
      %v1690 = vadd.f32 %v1446, %v1689
      %v1691 = vpop.f32.mrb[0].mxu0
      %1692 = vmatprep.mubr.f32.mxu0 0.0
      %1693 = vmatmul.mubr.f32.gmra.mrb[0].mxu0 %v1398
      %v1694 = vpop.f32.mrb[0].mxu0
      %v1695 = vadd.f32 %v1446, %v1694
      %v1696 = vpop.f32.mrb[0].mxu0
      %1697 = vmatprep.mubr.f32.mxu0 0.0
      %1698 = vmatmul.mubr.f32.gmra.mrb[0].mxu0 %v1399
      %v1699 = vpop.f32.mrb[0].mxu0
      %v1700 = vadd.f32 %v1446, %v1699
      %v1701 = vpop.f32.mrb[0].mxu0
      %1702 = vmatprep.mubr.f32.mxu0 0.0
      %1703 = vmatmul.mubr.f32.gmra.mrb[0].mxu0 %v1400
      %v1704 = vpop.f32.mrb[0].mxu0
      %v1705 = vadd.f32 %v1446, %v1704
      %v1706 = vpop.f32.mrb[0].mxu0
      %1707 = vmatprep.mubr.f32.mxu0 0.0
      %1708 = vmatmul.mubr.f32.gmra.mrb[0].mxu0 %v1401
      %v1709 = vpop.f32.mrb[0].mxu0
      %v1710 = vadd.f32 %v1446, %v1709
      %v1711 = vpop.f32.mrb[0].mxu0
      %1712 = vmatprep.mubr.f32.mxu0 0.0
      %1713 = vmatmul.mubr.f32.gmra.mrb[0].mxu0 %v1402
      %v1714 = vpop.f32.mrb[0].mxu0
      %v1715 = vadd.f32 %v1446, %v1714
      %v1716 = vpop.f32.mrb[0].mxu0
      %1717 = vmatprep.mubr.f32.mxu0 0.0
      %1718 = vmatmul.mubr.f32.gmra.mrb[0].mxu0 %v1403
      %v1719 = vpop.f32.mrb[0].mxu0
      %v1720 = vadd.f32 %v1446, %v1719
      %v1721 = vpop.f32.mrb[0].mxu0
      %1722 = vmatprep.mubr.f32.mxu0 0.0
      %1723 = vmatmul.mubr.f32.gmra.mrb[0].mxu0 %v1404
      %v1724 = vpop.f32.mrb[0].mxu0
      %v1725 = vadd.f32 %v1446, %v1724
      %v1726 = vpop.f32.mrb[0].mxu0
      %1727 = vmatprep.mubr.f32.mxu0 0.0
      %1728 = vmatmul.mubr.f32.gmra.mrb[0].mxu0 %v1405
      %v1729 = vpop.f32.mrb[0].mxu0
      %v1730 = vadd.f32 %v1446, %v1729
      %v1731 = vpop.f32.mrb[0].mxu0
      %1732 = vmatprep.mubr.f32.mxu0 0.0
      %1733 = vmatmul.mubr.f32.gmra.mrb[0].mxu0 %v1406
      %v1734 = vpop.f32.mrb[0].mxu0
      %v1735 = vadd.f32 %v1446, %v1734
      %v1736 = vpop.f32.mrb[0].mxu0
      %1737 = vmatprep.mubr.f32.mxu0 0.0
      %1738 = vmatmul.mubr.f32.gmra.mrb[0].mxu0 %v1407
      %v1739 = vpop.f32.mrb[0].mxu0
      %v1740 = vadd.f32 %v1446, %v1739
      %v1741 = vpop.f32.mrb[0].mxu0
      %1742 = vmatprep.mubr.f32.mxu0 0.0
      %1743 = vmatmul.mubr.f32.gmra.mrb[0].mxu0 %v1408
      %v1744 = vpop.f32.mrb[0].mxu0
      %v1745 = vadd.f32 %v1446, %v1744
      %v1746 = vpop.f32.mrb[0].mxu0
      %1747 = vmatprep.mubr.f32.mxu0 0.0
      %1748 = vmatmul.mubr.f32.gmra.mrb[0].mxu0 %v1409
      %v1749 = vpop.f32.mrb[0].mxu0
      %v1750 = vadd.f32 %v1446, %v1749
      %v1751 = vpop.f32.mrb[0].mxu0
      %1752 = vmatprep.mubr.f32.mxu0 0.0
      %1753 = vmatmul.mubr.f32.gmra.mrb[0].mxu0 %v1410
      %v1754 = vpop.f32.mrb[0].mxu0
      %v1755 = vadd.f32 %v1446, %v1754
      %v1756 = vpop.f32.mrb[0].mxu0
      %1757 = vmatprep.mubr.f32.mxu0 0.0
      %1758 = vmatmul.mubr.f32.gmra.mrb[0].mxu0 %v1411
      %v1759 = vpop.f32.mrb[0].mxu0
      %v1760 = vadd.f32 %v1446, %v1759
      %v1761 = vpop.f32.mrb[0].mxu0
      %1762 = vmatprep.mubr.f32.mxu0 0.0
      %1763 = vmatmul.mubr.f32.gmra.mrb[0].mxu0 %v1412
      %v1764 = vpop.f32.mrb[0].mxu0
      %v1765 = vadd.f32 %v1446, %v1764
      %v1766 = vpop.f32.mrb[0].mxu0
      %1767 = vmatprep.mubr.f32.mxu0 0.0
      %1768 = vmatmul.mubr.f32.gmra.mrb[0].mxu0 %v1413
      %v1769 = vpop.f32.mrb[0].mxu0
      %v1770 = vadd.f32 %v1446, %v1769
      %v1771 = vpop.f32.mrb[0].mxu0
      %1772 = vmatprep.mubr.f32.mxu0 0.0
      %1773 = vmatmul.mubr.f32.gmra.mrb[0].mxu0 %v1414
      %v1774 = vpop.f32.mrb[0].mxu0
      %v1775 = vadd.f32 %v1446, %v1774
      %v1776 = vpop.f32.mrb[0].mxu0
      %1777 = vmatprep.mubr.f32.mxu0 0.0
      %1778 = vmatmul.mubr.f32.gmra.mrb[0].mxu0 %v1415
      %v1779 = vpop.f32.mrb[0].mxu0
      %v1780 = vadd.f32 %v1446, %v1779
      %v1781 = vpop.f32.mrb[0].mxu0
      %1782 = vmatprep.mubr.f32.mxu0 0.0
      %1783 = vmatmul.mubr.f32.gmra.mrb[0].mxu0 %v1416
      %v1784 = vpop.f32.mrb[0].mxu0
      %v1785 = vadd.f32 %v1446, %v1784
      %v1786 = vpop.f32.mrb[0].mxu0
      %1787 = vmatprep.mubr.f32.mxu0 0.0
      %1788 = vmatmul.mubr.f32.gmra.mrb[0].mxu0 %v1417
      %v1789 = vpop.f32.mrb[0].mxu0
      %v1790 = vadd.f32 %v1446, %v1789
      %v1791 = vpop.f32.mrb[0].mxu0
      %1792 = vmatprep.mubr.f32.mxu0 0.0
      %1793 = vmatmul.mubr.f32.gmra.mrb[0].mxu0 %v1418
      %v1794 = vpop.f32.mrb[0].mxu0
      %v1795 = vadd.f32 %v1446, %v1794
      %v1796 = vpop.f32.mrb[0].mxu0
      %1797 = vmatprep.mubr.f32.mxu0 0.0
      %1798 = vmatmul.mubr.f32.gmra.mrb[0].mxu0 %v1419
      %v1799 = vpop.f32.mrb[0].mxu0
      %v1800 = vadd.f32 %v1446, %v1799
      %v1801 = vpop.f32.mrb[0].mxu0
      %1802 = vmatprep.mubr.f32.mxu0 0.0
      %1803 = vmatmul.mubr.f32.gmra.mrb[0].mxu0 %v1420
      %v1804 = vpop.f32.mrb[0].mxu0
      %v1805 = vadd.f32 %v1446, %v1804
      %v1806 = vpop.f32.mrb[0].mxu0
      %1807 = vmatprep.mubr.f32.mxu0 0.0
      %1808 = vmatmul.mubr.f32.gmra.mrb[0].mxu0 %v1421
      %v1809 = vpop.f32.mrb[0].mxu0
      %v1810 = vadd.f32 %v1446, %v1809
      %v1811 = vpop.f32.mrb[0].mxu0
      %1812 = vmatprep.mubr.f32.mxu0 0.0
      %1813 = vmatmul.mubr.f32.gmra.mrb[0].mxu0 %v1422
      %v1814 = vpop.f32.mrb[0].mxu0
      %v1815 = vadd.f32 %v1446, %v1814
      %v1816 = vpop.f32.mrb[0].mxu0
      %1817 = vmatprep.mubr.f32.mxu0 0.0
      %1818 = vmatmul.mubr.f32.gmra.mrb[0].mxu0 %v1423
      %v1819 = vpop.f32.mrb[0].mxu0
      %v1820 = vadd.f32 %v1446, %v1819
      %v1821 = vpop.f32.mrb[0].mxu0
      %1822 = vmatprep.mubr.f32.mxu0 0.0
      %1823 = vmatmul.mubr.f32.gmra.mrb[0].mxu0 %v1424
      %v1824 = vpop.f32.mrb[0].mxu0
      %v1825 = vadd.f32 %v1446, %v1824
      %v1826 = vpop.f32.mrb[0].mxu0
      %1827 = vdwg.mxu0
      %vm1828 = vcmask 64512
      %1829 = vst.msk [vmem:[%s253] sm:$0xff] %vm1828, %v1515
      %1830 = vst.msk [vmem:[%s253 + $0x8] sm:$0xff] %vm1828, %v1520
      %1831 = vst.msk [vmem:[%s253 + $0x10] sm:$0xff] %vm1828, %v1525
      %1832 = vst.msk [vmem:[%s253 + $0x18] sm:$0xff] %vm1828, %v1530
      %1833 = vst.msk [vmem:[%s253 + $0x20] sm:$0xff] %vm1828, %v1535
      %1834 = vst.msk [vmem:[%s253 + $0x28] sm:$0xff] %vm1828, %v1540
      %1835 = vst.msk [vmem:[%s253 + $0x30] sm:$0xff] %vm1828, %v1545
      %1836 = vst.msk [vmem:[%s253 + $0x38] sm:$0xff] %vm1828, %v1550
      %1837 = vst.msk [vmem:[%s253 + $0x40] sm:$0xff] %vm1828, %v1555
      %1838 = vst.msk [vmem:[%s253 + $0x48] sm:$0xff] %vm1828, %v1560
      %1839 = vst.msk [vmem:[%s253 + $0x50] sm:$0xff] %vm1828, %v1565
      %1840 = vst.msk [vmem:[%s253 + $0x58] sm:$0xff] %vm1828, %v1570
      %1841 = vst.msk [vmem:[%s253 + $0x60] sm:$0xff] %vm1828, %v1575
      %1842 = vst.msk [vmem:[%s253 + $0x68] sm:$0xff] %vm1828, %v1580
      %1843 = vst.msk [vmem:[%s253 + $0x70] sm:$0xff] %vm1828, %v1585
      %1844 = vst.msk [vmem:[%s253 + $0x78] sm:$0xff] %vm1828, %v1590
      %1845 = vst.msk [vmem:[%s253 + $0x80] sm:$0xff] %vm1828, %v1595
      %1846 = vst.msk [vmem:[%s253 + $0x88] sm:$0xff] %vm1828, %v1600
      %1847 = vst.msk [vmem:[%s253 + $0x90] sm:$0xff] %vm1828, %v1605
      %1848 = vst.msk [vmem:[%s253 + $0x98] sm:$0xff] %vm1828, %v1610
      %1849 = vst.msk [vmem:[%s253 + $0xa0] sm:$0xff] %vm1828, %v1615
      %1850 = vst.msk [vmem:[%s253 + $0xa8] sm:$0xff] %vm1828, %v1620
      %1851 = vst.msk [vmem:[%s253 + $0xb0] sm:$0xff] %vm1828, %v1625
      %1852 = vst.msk [vmem:[%s253 + $0xb8] sm:$0xff] %vm1828, %v1630
      %1853 = vst.msk [vmem:[%s253 + $0xc0] sm:$0xff] %vm1828, %v1635
      %1854 = vst.msk [vmem:[%s253 + $0xc8] sm:$0xff] %vm1828, %v1640
      %1855 = vst.msk [vmem:[%s253 + $0xd0] sm:$0xff] %vm1828, %v1645
      %1856 = vst.msk [vmem:[%s253 + $0xd8] sm:$0xff] %vm1828, %v1650
      %1857 = vst.msk [vmem:[%s253 + $0xe0] sm:$0xff] %vm1828, %v1655
      %1858 = vst.msk [vmem:[%s253 + $0xe8] sm:$0xff] %vm1828, %v1660
      %1859 = vst.msk [vmem:[%s253 + $0xf0] sm:$0xff] %vm1828, %v1665
      %1860 = vst.msk [vmem:[%s253 + $0xf8] sm:$0xff] %vm1828, %v1670
      %1861 = vst.msk [vmem:[%s253 + $0x100] sm:$0xff] %vm1828, %v1675
      %1862 = vst.msk [vmem:[%s253 + $0x108] sm:$0xff] %vm1828, %v1680
      %1863 = vst.msk [vmem:[%s253 + $0x110] sm:$0xff] %vm1828, %v1685
      %1864 = vst.msk [vmem:[%s253 + $0x118] sm:$0xff] %vm1828, %v1690
      %1865 = vst.msk [vmem:[%s253 + $0x120] sm:$0xff] %vm1828, %v1695
      %1866 = vst.msk [vmem:[%s253 + $0x128] sm:$0xff] %vm1828, %v1700
      %1867 = vst.msk [vmem:[%s253 + $0x130] sm:$0xff] %vm1828, %v1705
      %1868 = vst.msk [vmem:[%s253 + $0x138] sm:$0xff] %vm1828, %v1710
      %1869 = vst.msk [vmem:[%s253 + $0x140] sm:$0xff] %vm1828, %v1715
      %1870 = vst.msk [vmem:[%s253 + $0x148] sm:$0xff] %vm1828, %v1720
      %1871 = vst.msk [vmem:[%s253 + $0x150] sm:$0xff] %vm1828, %v1725
      %1872 = vst.msk [vmem:[%s253 + $0x158] sm:$0xff] %vm1828, %v1730
      %1873 = vst.msk [vmem:[%s253 + $0x160] sm:$0xff] %vm1828, %v1735
      %1874 = vst.msk [vmem:[%s253 + $0x168] sm:$0xff] %vm1828, %v1740
      %1875 = vst.msk [vmem:[%s253 + $0x170] sm:$0xff] %vm1828, %v1745
      %1876 = vst.msk [vmem:[%s253 + $0x178] sm:$0xff] %vm1828, %v1750
      %1877 = vst.msk [vmem:[%s253 + $0x180] sm:$0xff] %vm1828, %v1755
      %1878 = vst.msk [vmem:[%s253 + $0x188] sm:$0xff] %vm1828, %v1760
      %1879 = vst.msk [vmem:[%s253 + $0x190] sm:$0xff] %vm1828, %v1765
      %1880 = vst.msk [vmem:[%s253 + $0x198] sm:$0xff] %vm1828, %v1770
      %1881 = vst.msk [vmem:[%s253 + $0x1a0] sm:$0xff] %vm1828, %v1775
      %1882 = vst.msk [vmem:[%s253 + $0x1a8] sm:$0xff] %vm1828, %v1780
      %1883 = vst.msk [vmem:[%s253 + $0x1b0] sm:$0xff] %vm1828, %v1785
      %1884 = vst.msk [vmem:[%s253 + $0x1b8] sm:$0xff] %vm1828, %v1790
      %1885 = vst.msk [vmem:[%s253 + $0x1c0] sm:$0xff] %vm1828, %v1795
      %1886 = vst.msk [vmem:[%s253 + $0x1c8] sm:$0xff] %vm1828, %v1800
      %1887 = vst.msk [vmem:[%s253 + $0x1d0] sm:$0xff] %vm1828, %v1805
      %1888 = vst.msk [vmem:[%s253 + $0x1d8] sm:$0xff] %vm1828, %v1810
      %1889 = vst.msk [vmem:[%s253 + $0x1e0] sm:$0xff] %vm1828, %v1815
      %1890 = vst.msk [vmem:[%s253 + $0x1e8] sm:$0xff] %vm1828, %v1820
      %1891 = vst.msk [vmem:[%s253 + $0x1f0] sm:$0xff] %vm1828, %v1825
      %s1892 = smul.u32 63, %s17
      %p1893 = scmp.lt.s32.totalorder %s1892, 125
      %s1894 = scalar_select %p1893, %s1892, 125
      %s1895 = smul.addr %s1894, 8
      %s1896 = scalar_lea.vmem %s6, %s1895
      // Predicated region
      $region45: #{mlp_forward.1} parent=43 // pred_check
        %p1897 = pneg %p166
      $region46: #{mlp_forward.1} parent=43 // pred_check_branch
        %1899 = sbr.rel (%p1897) target = $region48
      $region47: #{mlp_forward.1} parent=43 // pred_region
        %s1900 = smul.u32 63, %s17
      $region48: #{mlp_forward.1} parent=43 // pred_fallthru
        _
    $region44: #{mlp_forward.1} parent=5 // pred_fallthru
      _
    %p1901 = scmp.le.s32.totalorder 2, %s12
    // Predicated region
    $region49: #{mlp_forward.1} parent=5 // pred_check
      %p1902 = pneg %p1901
    $region50: #{mlp_forward.1} parent=5 // pred_check_branch
      %1904 = sbr.rel (%p1902) target = $region52
    $region51: #{mlp_forward.1} parent=5 // pred_region
      %s1905 = ssub.s32 %s12, 2
      // Predicated region
      $region53: #{mlp_forward.1} parent=51 // pred_check
        %p1906 = pneg %p172
      $region54: #{mlp_forward.1} parent=51 // pred_check_branch
        %1908 = sbr.rel (%p1906) target = $region56
      $region55: #{mlp_forward.1} parent=51 // pred_region
        %s1909 = smul.u32 63, %s18
        %p1910 = scmp.lt.s32.totalorder %s1909, 125
        %s1911 = scalar_select %p1910, %s1909, 125
        %s1912 = smul.addr %s1911, 8
        %s1913 = scalar_lea.vmem %s6, %s1912
      $region56: #{mlp_forward.1} parent=51 // pred_fallthru
        _
    $region52: #{mlp_forward.1} parent=5 // pred_fallthru
      _
  $region6: #{mlp_forward.1} parent=0 // loop_footer
    %s16 = sadd.s32 1, %s12
  $region7: #{mlp_forward.1} parent=0 // loop_footer_branch
    %11 = sbr.rel target = $region3
  $region8: #{mlp_forward.1} parent=0 // loop_exit
    _

</llo_original>
